<compile_context>
chip_gen: v6e
topology: v6e:2x2x1
jax: 0.10.0
libtpu: 0.0.40
codegen_flags: <defaults>
</compile_context>

<pallas_src>
import functools

import jax
import jax.numpy as jnp
from jax.experimental import pallas as pl
from jax.experimental.pallas import tpu as pltpu

EPS = 1e-5


def _dense_layer_kernel(x_ref, s1_ref, t1_ref, w1t_ref, b2_ref, w2t_ref,
                        o_ref, pad_ref, *, width, pad_lanes):
    """Fused BN1+ReLU -> 1x1 conv (BN2 folded) + ReLU -> 3x3 conv (pad=1)."""
    Cin, HW = x_ref.shape
    Cmid = w1t_ref.shape[0]
    Cout = o_ref.shape[0]
    W = width

    # BN1 + ReLU on the (Cin, H*W) lane-dense layout (per-channel FMA, f32).
    xa = jnp.maximum(x_ref[...] * s1_ref[...] + t1_ref[...], 0.0)

    # 1x1 conv (BN2 scale pre-folded into w1t) as Cin outer-product FMAs on the
    # VPU, then BN2 shift + ReLU.  All f32 (no MXU push/pop for K=4).
    w1t = w1t_ref[...]                                         # (Cmid, Cin) f32
    mid = w1t[:, 0:1] * xa[0:1, :]
    for c in range(1, Cin):
        mid = mid + w1t[:, c:c + 1] * xa[c:c + 1, :]
    mid = jnp.maximum(mid + b2_ref[...], 0.0)                  # (Cmid, HW) f32

    # Zero only the (W+1)-lane halo borders (every step: megacore-safe), then one
    # lane-ALIGNED interior store of the bf16 bottleneck (interior starts at a
    # multiple of 128 lanes).
    zero_border = jnp.zeros((Cmid, W + 1), jnp.bfloat16)
    pad_ref[:, pad_lanes - (W + 1):pad_lanes] = zero_border
    pad_ref[:, pad_lanes + HW:pad_lanes + HW + (W + 1)] = zero_border
    pad_ref[:, pad_lanes:pad_lanes + HW] = mid.astype(jnp.bfloat16)

    # Column-edge validity masks for padding=1.  Row-out-of-range taps already
    # read the zero border; only x-direction wrap into the neighbouring row
    # needs masking.
    col = jax.lax.broadcasted_iota(jnp.int32, (1, HW), 1) % W
    left_ok = col >= 1            # for dx == 0 taps (source x-1)
    right_ok = col <= W - 2       # for dx == 2 taps (source x+1)

    # 3x3 conv: 9 accumulated (Cout, Cmid) @ (Cmid, HW) dots; no im2col buffer,
    # H*W stays on the lane axis so the output needs no repack.
    acc = jnp.zeros((Cout, HW), jnp.float32)
    for dy in range(3):
        for dx in range(3):
            start = pad_lanes + (dy - 1) * W + (dx - 1)
            tap = pad_ref[:, start:start + HW]                 # (Cmid, HW) bf16
            contrib = jnp.dot(w2t_ref[dy * 3 + dx], tap,
                              preferred_element_type=jnp.float32)
            if dx == 0:
                contrib = jnp.where(left_ok, contrib, 0.0)
            elif dx == 2:
                contrib = jnp.where(right_ok, contrib, 0.0)
            acc = acc + contrib

    o_ref[...] = acc


def dense_layer_forward(x_nchw, params, *, eps=EPS):
    """Runs the _DenseLayer forward (eval mode). x_nchw: (N, Cin, H, W) float32."""
    N, Cin, H, W = x_nchw.shape
    Cmid = params["w1"].shape[1]      # bn_size * growth_rate
    Cout = params["w2"].shape[3]      # growth_rate
    HW = H * W
    # Interior of the padded scratch starts at a lane-aligned offset >= W+1.
    pad_lanes = ((W + 1 + 127) // 128) * 128

    # NCHW -> (N, Cin, H*W): free reshape (channels on sublanes, pixels on lanes).
    x_p = x_nchw.astype(jnp.float32).reshape(N, Cin, HW)

    # BN1 affine (inference stats) as per-channel scale/shift columns.
    s1 = params["g1"] * jax.lax.rsqrt(params["v1"] + eps)
    t1 = params["b1"] - params["m1"] * s1
    s1c = s1.reshape(Cin, 1).astype(jnp.float32)
    t1c = t1.reshape(Cin, 1).astype(jnp.float32)

    # Fold BN2 scale into the 1x1 conv weight (exact: conv1 is linear, no bias);
    # keep it transposed (Cmid, Cin) and in f32 for the VPU FMAs.
    s2 = params["g2"] * jax.lax.rsqrt(params["v2"] + eps)
    t2 = params["b2"] - params["m2"] * s2
    w1t = (params["w1"] * s2[None, :]).T.astype(jnp.float32)        # (Cmid, Cin)
    b2c = t2.reshape(Cmid, 1).astype(jnp.float32)

    # 3x3 HWIO weight -> 9 transposed (Cout, Cmid) tap matrices (bf16 for the MXU).
    w2t = jnp.transpose(params["w2"], (0, 1, 3, 2)).reshape(9, Cout, Cmid)
    w2t = w2t.astype(jnp.bfloat16)

    kernel = functools.partial(_dense_layer_kernel, width=W, pad_lanes=pad_lanes)
    out_p = pl.pallas_call(
        kernel,
        out_shape=jax.ShapeDtypeStruct((N, Cout, HW), jnp.float32),
        grid=(N,),
        in_specs=[
            pl.BlockSpec((None, Cin, HW), lambda n: (n, 0, 0)),     # x (per image)
            pl.BlockSpec((Cin, 1), lambda n: (0, 0)),               # BN1 scale
            pl.BlockSpec((Cin, 1), lambda n: (0, 0)),               # BN1 shift
            pl.BlockSpec((Cmid, Cin), lambda n: (0, 0)),            # conv1^T (BN2-folded)
            pl.BlockSpec((Cmid, 1), lambda n: (0, 0)),              # BN2 shift
            pl.BlockSpec((9, Cout, Cmid), lambda n: (0, 0, 0)),     # conv2 tap weights^T
        ],
        out_specs=pl.BlockSpec((None, Cout, HW), lambda n: (n, 0, 0)),
        scratch_shapes=[pltpu.VMEM((Cmid, pad_lanes + HW + pad_lanes),
                                   jnp.bfloat16)],
        compiler_params=pltpu.CompilerParams(
            dimension_semantics=("parallel",)),
    )(x_p, s1c, t1c, w1t, b2c, w2t)

    # Dropout: eval mode -> identity.  (N, Cout, H*W) -> NCHW is a free reshape.
    return out_p.reshape(N, Cout, H, W)


def _reference(x_nchw, params):
    """Pure-JAX f32 reference for correctness checking."""
    x = jnp.transpose(x_nchw, (0, 2, 3, 1)).astype(jnp.float32)
    s1 = params["g1"] * jax.lax.rsqrt(params["v1"] + EPS)
    xa = jnp.maximum(x * s1 + (params["b1"] - params["m1"] * s1), 0.0)
    Cin, Cmid = params["w1"].shape
    y = jax.lax.conv_general_dilated(
        xa, params["w1"].reshape(1, 1, Cin, Cmid), (1, 1), "VALID",
        dimension_numbers=("NHWC", "HWIO", "NHWC"))
    s2 = params["g2"] * jax.lax.rsqrt(params["v2"] + EPS)
    ya = jnp.maximum(y * s2 + (params["b2"] - params["m2"] * s2), 0.0)
    z = jax.lax.conv_general_dilated(
        ya, params["w2"], (1, 1), [(1, 1), (1, 1)],
        dimension_numbers=("NHWC", "HWIO", "NHWC"))
    return jnp.transpose(z, (0, 3, 1, 2))


if __name__ == "__main__":
    # _DenseLayer(num_input_features=4, growth_rate=8, bn_size=4, drop_rate=0.0)
    num_input_features, growth_rate, bn_size = 4, 8, 4
    Cin = num_input_features
    Cmid = bn_size * growth_rate      # 32
    Cout = growth_rate                # 8
    N, H, W = 2, 16, 16

    key = jax.random.PRNGKey(0)
    ks = jax.random.split(key, 11)
    params = {
        # BN1 (over Cin channels)
        "g1": 1.0 + 0.1 * jax.random.normal(ks[0], (Cin,), jnp.float32),
        "b1": 0.1 * jax.random.normal(ks[1], (Cin,), jnp.float32),
        "m1": 0.1 * jax.random.normal(ks[2], (Cin,), jnp.float32),
        "v1": jax.random.uniform(ks[3], (Cin,), jnp.float32, 0.5, 1.5),
        # conv1: 1x1, Cin -> Cmid, no bias (stored as (Cin, Cmid) matmul weight)
        "w1": 0.1 * jax.random.normal(ks[4], (Cin, Cmid), jnp.float32),
        # BN2 (over Cmid channels)
        "g2": 1.0 + 0.1 * jax.random.normal(ks[5], (Cmid,), jnp.float32),
        "b2": 0.1 * jax.random.normal(ks[6], (Cmid,), jnp.float32),
        "m2": 0.1 * jax.random.normal(ks[7], (Cmid,), jnp.float32),
        "v2": jax.random.uniform(ks[8], (Cmid,), jnp.float32, 0.5, 1.5),
        # conv2: 3x3, Cmid -> Cout, padding=1, no bias (HWIO layout)
        "w2": 0.1 * jax.random.normal(ks[9], (3, 3, Cmid, Cout), jnp.float32),
    }

    x = jax.random.normal(ks[10], (N, Cin, H, W), jnp.float32)

    fwd = jax.jit(dense_layer_forward)
    out = jax.block_until_ready(fwd(x, params))
    ref = jax.block_until_ready(_reference(x, params))

    assert out.shape == (N, Cout, H, W), out.shape
    # conv1 / elementwise math stays f32; only the 3x3 conv uses bf16 MXU operands.
    err = float(jnp.max(jnp.abs(out - ref)))
    assert jnp.allclose(out, ref, atol=2e-2, rtol=2e-2), err
    print("KERNEL_OK")
</pallas_src>

<mosaic_0001>
module attributes {stable_mosaic.version = 11 : i64} {
  func.func @_dense_layer_kernel(%arg0: i32, %arg1: memref<1x4x256xf32, #tpu.memory_space<vmem>>, %arg2: memref<4x1xf32, #tpu.memory_space<vmem>>, %arg3: memref<4x1xf32, #tpu.memory_space<vmem>>, %arg4: memref<32x4xf32, #tpu.memory_space<vmem>>, %arg5: memref<32x1xf32, #tpu.memory_space<vmem>>, %arg6: memref<9x8x32xbf16, #tpu.memory_space<vmem>>, %arg7: memref<1x8x256xf32, #tpu.memory_space<vmem>>, %arg8: memref<32x512xbf16, #tpu.memory_space<vmem>>) attributes {dimension_semantics = [#tpu.dimension_semantics<parallel>], iteration_bounds = array<i64: 2>, scalar_prefetch = 0 : i64, scratch_operands = 1 : i64, tpu.core_type = #tpu.core_type<tc>, window_params = [{transform_indices = @transform_0, window_bounds = array<i64: 1, 4, 256>}, {pipeline_mode = #tpu.pipeline_mode<synchronous>, transform_indices = @transform_1, window_bounds = array<i64: 4, 1>}, {pipeline_mode = #tpu.pipeline_mode<synchronous>, transform_indices = @transform_2, window_bounds = array<i64: 4, 1>}, {pipeline_mode = #tpu.pipeline_mode<synchronous>, transform_indices = @transform_3, window_bounds = array<i64: 32, 4>}, {pipeline_mode = #tpu.pipeline_mode<synchronous>, transform_indices = @transform_4, window_bounds = array<i64: 32, 1>}, {pipeline_mode = #tpu.pipeline_mode<synchronous>, transform_indices = @transform_5, window_bounds = array<i64: 9, 8, 32>}, {transform_indices = @transform_6, window_bounds = array<i64: 1, 8, 256>}]} {
    %c0 = arith.constant 0 : index
    %c0_0 = arith.constant 0 : index
    %c0_1 = arith.constant 0 : index
    %0 = vector.load %arg1[%c0, %c0_0, %c0_1] : memref<1x4x256xf32, #tpu.memory_space<vmem>>, vector<1x4x256xf32>
    %1 = vector.shape_cast %0 : vector<1x4x256xf32> to vector<4x256xf32>
    %c0_2 = arith.constant 0 : index
    %c0_3 = arith.constant 0 : index
    %2 = vector.load %arg2[%c0_2, %c0_3] : memref<4x1xf32, #tpu.memory_space<vmem>>, vector<4x1xf32>
    %3 = vector.broadcast %2 : vector<4x1xf32> to vector<4x256xf32>
    %4 = arith.mulf %1, %3 : vector<4x256xf32>
    %c0_4 = arith.constant 0 : index
    %c0_5 = arith.constant 0 : index
    %5 = vector.load %arg3[%c0_4, %c0_5] : memref<4x1xf32, #tpu.memory_space<vmem>>, vector<4x1xf32>
    %6 = vector.broadcast %5 : vector<4x1xf32> to vector<4x256xf32>
    %7 = arith.addf %4, %6 : vector<4x256xf32>
    %cst = arith.constant 0.000000e+00 : f32
    %8 = vector.broadcast %cst : f32 to vector<4x256xf32>
    %9 = arith.maximumf %7, %8 : vector<4x256xf32>
    %c0_6 = arith.constant 0 : index
    %c0_7 = arith.constant 0 : index
    %10 = vector.load %arg4[%c0_6, %c0_7] : memref<32x4xf32, #tpu.memory_space<vmem>>, vector<32x4xf32>
    %11 = vector.extract_strided_slice %10 {offsets = [0, 0], sizes = [32, 1], strides = [1, 1]} : vector<32x4xf32> to vector<32x1xf32>
    %12 = vector.extract_strided_slice %9 {offsets = [0, 0], sizes = [1, 256], strides = [1, 1]} : vector<4x256xf32> to vector<1x256xf32>
    %13 = vector.broadcast %11 : vector<32x1xf32> to vector<32x256xf32>
    %14 = vector.broadcast %12 : vector<1x256xf32> to vector<32x256xf32>
    %15 = arith.mulf %13, %14 : vector<32x256xf32>
    %16 = vector.extract_strided_slice %10 {offsets = [0, 1], sizes = [32, 1], strides = [1, 1]} : vector<32x4xf32> to vector<32x1xf32>
    %17 = vector.extract_strided_slice %9 {offsets = [1, 0], sizes = [1, 256], strides = [1, 1]} : vector<4x256xf32> to vector<1x256xf32>
    %18 = vector.broadcast %16 : vector<32x1xf32> to vector<32x256xf32>
    %19 = vector.broadcast %17 : vector<1x256xf32> to vector<32x256xf32>
    %20 = arith.mulf %18, %19 : vector<32x256xf32>
    %21 = arith.addf %15, %20 : vector<32x256xf32>
    %22 = vector.extract_strided_slice %10 {offsets = [0, 2], sizes = [32, 1], strides = [1, 1]} : vector<32x4xf32> to vector<32x1xf32>
    %23 = vector.extract_strided_slice %9 {offsets = [2, 0], sizes = [1, 256], strides = [1, 1]} : vector<4x256xf32> to vector<1x256xf32>
    %24 = vector.broadcast %22 : vector<32x1xf32> to vector<32x256xf32>
    %25 = vector.broadcast %23 : vector<1x256xf32> to vector<32x256xf32>
    %26 = arith.mulf %24, %25 : vector<32x256xf32>
    %27 = arith.addf %21, %26 : vector<32x256xf32>
    %28 = vector.extract_strided_slice %10 {offsets = [0, 3], sizes = [32, 1], strides = [1, 1]} : vector<32x4xf32> to vector<32x1xf32>
    %29 = vector.extract_strided_slice %9 {offsets = [3, 0], sizes = [1, 256], strides = [1, 1]} : vector<4x256xf32> to vector<1x256xf32>
    %30 = vector.broadcast %28 : vector<32x1xf32> to vector<32x256xf32>
    %31 = vector.broadcast %29 : vector<1x256xf32> to vector<32x256xf32>
    %32 = arith.mulf %30, %31 : vector<32x256xf32>
    %33 = arith.addf %27, %32 : vector<32x256xf32>
    %c0_8 = arith.constant 0 : index
    %c0_9 = arith.constant 0 : index
    %34 = vector.load %arg5[%c0_8, %c0_9] : memref<32x1xf32, #tpu.memory_space<vmem>>, vector<32x1xf32>
    %35 = vector.broadcast %34 : vector<32x1xf32> to vector<32x256xf32>
    %36 = arith.addf %33, %35 : vector<32x256xf32>
    %cst_10 = arith.constant 0.000000e+00 : f32
    %37 = vector.broadcast %cst_10 : f32 to vector<32x256xf32>
    %38 = arith.maximumf %36, %37 : vector<32x256xf32>
    %cst_11 = arith.constant 0.000000e+00 : bf16
    %39 = vector.broadcast %cst_11 : bf16 to vector<32x17xbf16>
    %c0_12 = arith.constant 0 : index
    %c111 = arith.constant 111 : index
    %40 = vector.load %arg8[%c0_12, %c111] : memref<32x512xbf16, #tpu.memory_space<vmem>>, vector<32x17xbf16>
    tpu.vector_store %arg8[%c0_12, %c111], %39 {strides = array<i32>} : memref<32x512xbf16, #tpu.memory_space<vmem>>, vector<32x17xbf16>,
    %c0_13 = arith.constant 0 : index
    %c384 = arith.constant 384 : index
    %41 = vector.load %arg8[%c0_13, %c384] : memref<32x512xbf16, #tpu.memory_space<vmem>>, vector<32x17xbf16>
    tpu.vector_store %arg8[%c0_13, %c384], %39 {strides = array<i32>} : memref<32x512xbf16, #tpu.memory_space<vmem>>, vector<32x17xbf16>,
    %42 = arith.truncf %38 : vector<32x256xf32> to vector<32x256xbf16>
    %c0_14 = arith.constant 0 : index
    %c128 = arith.constant 128 : index
    %43 = vector.load %arg8[%c0_14, %c128] : memref<32x512xbf16, #tpu.memory_space<vmem>>, vector<32x256xbf16>
    tpu.vector_store %arg8[%c0_14, %c128], %42 {strides = array<i32>} : memref<32x512xbf16, #tpu.memory_space<vmem>>, vector<32x256xbf16>,
    %44 = tpu.iota {dimensions = array<i32: 1>} : vector<1x256xi32>
    %c16_i32 = arith.constant 16 : i32
    %c0_i32 = arith.constant 0 : i32
    %45 = arith.cmpi eq, %c16_i32, %c0_i32 : i32
    %c1_i32 = arith.constant 1 : i32
    %46 = arith.select %45, %c1_i32, %c16_i32 : i32
    %47 = vector.broadcast %46 : i32 to vector<1x256xi32>
    %48 = arith.remsi %44, %47 : vector<1x256xi32>
    %c0_i32_15 = arith.constant 0 : i32
    %49 = vector.broadcast %c0_i32_15 : i32 to vector<1x256xi32>
    %50 = arith.cmpi ne, %48, %49 : vector<1x256xi32>
    %c0_i32_16 = arith.constant 0 : i32
    %51 = vector.broadcast %c0_i32_16 : i32 to vector<1x256xi32>
    %52 = arith.cmpi slt, %48, %51 : vector<1x256xi32>
    %c0_i32_17 = arith.constant 0 : i32
    %53 = arith.cmpi slt, %46, %c0_i32_17 : i32
    %54 = vector.broadcast %53 : i1 to vector<1x256xi1>
    %55 = vector.broadcast %54 : vector<1x256xi1> to vector<1x256xi1>
    %56 = arith.xori %52, %55 : vector<1x256xi1>
    %57 = arith.andi %56, %50 : vector<1x256xi1>
    %58 = vector.broadcast %46 : i32 to vector<1x256xi32>
    %59 = arith.addi %48, %58 : vector<1x256xi32>
    %60 = arith.select %57, %59, %48 : vector<1x256xi1>, vector<1x256xi32>
    %c1_i32_18 = arith.constant 1 : i32
    %61 = vector.broadcast %c1_i32_18 : i32 to vector<1x256xi32>
    %62 = arith.cmpi sge, %60, %61 : vector<1x256xi32>
    %c14_i32 = arith.constant 14 : i32
    %63 = vector.broadcast %c14_i32 : i32 to vector<1x256xi32>
    %64 = arith.cmpi sle, %60, %63 : vector<1x256xi32>
    %cst_19 = arith.constant 0.000000e+00 : f32
    %65 = vector.broadcast %cst_19 : f32 to vector<8x256xf32>
    %c0_20 = arith.constant 0 : index
    %c111_21 = arith.constant 111 : index
    %66 = vector.load %arg8[%c0_20, %c111_21] : memref<32x512xbf16, #tpu.memory_space<vmem>>, vector<32x256xbf16>
    %c0_22 = arith.constant 0 : index
    %c0_23 = arith.constant 0 : index
    %c0_24 = arith.constant 0 : index
    %67 = vector.load %arg6[%c0_22, %c0_23, %c0_24] : memref<9x8x32xbf16, #tpu.memory_space<vmem>>, vector<1x8x32xbf16>
    %68 = vector.shape_cast %67 : vector<1x8x32xbf16> to vector<8x32xbf16>
    %cst_25 = arith.constant dense<0.000000e+00> : vector<8x256xf32>
    %69 = tpu.matmul %68, %66, %cst_25 {dimension_numbers = #tpu.dot_dimension_numbers<[1], [0], [0], [1], [0, 0, 1, 1], [], []>} : vector<8x32xbf16>, vector<32x256xbf16>, vector<8x256xf32> -> vector<8x256xf32>
    %cst_26 = arith.constant 0.000000e+00 : f32
    %70 = vector.shape_cast %62 : vector<1x256xi1> to vector<1x256xi1>
    %71 = vector.broadcast %70 : vector<1x256xi1> to vector<8x256xi1>
    %72 = vector.broadcast %cst_26 : f32 to vector<8x256xf32>
    %73 = arith.select %71, %69, %72 : vector<8x256xi1>, vector<8x256xf32>
    %74 = arith.addf %65, %73 : vector<8x256xf32>
    %c0_27 = arith.constant 0 : index
    %c112 = arith.constant 112 : index
    %75 = vector.load %arg8[%c0_27, %c112] : memref<32x512xbf16, #tpu.memory_space<vmem>>, vector<32x256xbf16>
    %c1 = arith.constant 1 : index
    %c0_28 = arith.constant 0 : index
    %c0_29 = arith.constant 0 : index
    %76 = vector.load %arg6[%c1, %c0_28, %c0_29] : memref<9x8x32xbf16, #tpu.memory_space<vmem>>, vector<1x8x32xbf16>
    %77 = vector.shape_cast %76 : vector<1x8x32xbf16> to vector<8x32xbf16>
    %cst_30 = arith.constant dense<0.000000e+00> : vector<8x256xf32>
    %78 = tpu.matmul %77, %75, %cst_30 {dimension_numbers = #tpu.dot_dimension_numbers<[1], [0], [0], [1], [0, 0, 1, 1], [], []>} : vector<8x32xbf16>, vector<32x256xbf16>, vector<8x256xf32> -> vector<8x256xf32>
    %79 = arith.addf %74, %78 : vector<8x256xf32>
    %c0_31 = arith.constant 0 : index
    %c113 = arith.constant 113 : index
    %80 = vector.load %arg8[%c0_31, %c113] : memref<32x512xbf16, #tpu.memory_space<vmem>>, vector<32x256xbf16>
    %c2 = arith.constant 2 : index
    %c0_32 = arith.constant 0 : index
    %c0_33 = arith.constant 0 : index
    %81 = vector.load %arg6[%c2, %c0_32, %c0_33] : memref<9x8x32xbf16, #tpu.memory_space<vmem>>, vector<1x8x32xbf16>
    %82 = vector.shape_cast %81 : vector<1x8x32xbf16> to vector<8x32xbf16>
    %cst_34 = arith.constant dense<0.000000e+00> : vector<8x256xf32>
    %83 = tpu.matmul %82, %80, %cst_34 {dimension_numbers = #tpu.dot_dimension_numbers<[1], [0], [0], [1], [0, 0, 1, 1], [], []>} : vector<8x32xbf16>, vector<32x256xbf16>, vector<8x256xf32> -> vector<8x256xf32>
    %cst_35 = arith.constant 0.000000e+00 : f32
    %84 = vector.shape_cast %64 : vector<1x256xi1> to vector<1x256xi1>
    %85 = vector.broadcast %84 : vector<1x256xi1> to vector<8x256xi1>
    %86 = vector.broadcast %cst_35 : f32 to vector<8x256xf32>
    %87 = arith.select %85, %83, %86 : vector<8x256xi1>, vector<8x256xf32>
    %88 = arith.addf %79, %87 : vector<8x256xf32>
    %c0_36 = arith.constant 0 : index
    %c127 = arith.constant 127 : index
    %89 = vector.load %arg8[%c0_36, %c127] : memref<32x512xbf16, #tpu.memory_space<vmem>>, vector<32x256xbf16>
    %c3 = arith.constant 3 : index
    %c0_37 = arith.constant 0 : index
    %c0_38 = arith.constant 0 : index
    %90 = vector.load %arg6[%c3, %c0_37, %c0_38] : memref<9x8x32xbf16, #tpu.memory_space<vmem>>, vector<1x8x32xbf16>
    %91 = vector.shape_cast %90 : vector<1x8x32xbf16> to vector<8x32xbf16>
    %cst_39 = arith.constant dense<0.000000e+00> : vector<8x256xf32>
    %92 = tpu.matmul %91, %89, %cst_39 {dimension_numbers = #tpu.dot_dimension_numbers<[1], [0], [0], [1], [0, 0, 1, 1], [], []>} : vector<8x32xbf16>, vector<32x256xbf16>, vector<8x256xf32> -> vector<8x256xf32>
    %cst_40 = arith.constant 0.000000e+00 : f32
    %93 = vector.shape_cast %62 : vector<1x256xi1> to vector<1x256xi1>
    %94 = vector.broadcast %93 : vector<1x256xi1> to vector<8x256xi1>
    %95 = vector.broadcast %cst_40 : f32 to vector<8x256xf32>
    %96 = arith.select %94, %92, %95 : vector<8x256xi1>, vector<8x256xf32>
    %97 = arith.addf %88, %96 : vector<8x256xf32>
    %c0_41 = arith.constant 0 : index
    %c128_42 = arith.constant 128 : index
    %98 = vector.load %arg8[%c0_41, %c128_42] : memref<32x512xbf16, #tpu.memory_space<vmem>>, vector<32x256xbf16>
    %c4 = arith.constant 4 : index
    %c0_43 = arith.constant 0 : index
    %c0_44 = arith.constant 0 : index
    %99 = vector.load %arg6[%c4, %c0_43, %c0_44] : memref<9x8x32xbf16, #tpu.memory_space<vmem>>, vector<1x8x32xbf16>
    %100 = vector.shape_cast %99 : vector<1x8x32xbf16> to vector<8x32xbf16>
    %cst_45 = arith.constant dense<0.000000e+00> : vector<8x256xf32>
    %101 = tpu.matmul %100, %98, %cst_45 {dimension_numbers = #tpu.dot_dimension_numbers<[1], [0], [0], [1], [0, 0, 1, 1], [], []>} : vector<8x32xbf16>, vector<32x256xbf16>, vector<8x256xf32> -> vector<8x256xf32>
    %102 = arith.addf %97, %101 : vector<8x256xf32>
    %c0_46 = arith.constant 0 : index
    %c129 = arith.constant 129 : index
    %103 = vector.load %arg8[%c0_46, %c129] : memref<32x512xbf16, #tpu.memory_space<vmem>>, vector<32x256xbf16>
    %c5 = arith.constant 5 : index
    %c0_47 = arith.constant 0 : index
    %c0_48 = arith.constant 0 : index
    %104 = vector.load %arg6[%c5, %c0_47, %c0_48] : memref<9x8x32xbf16, #tpu.memory_space<vmem>>, vector<1x8x32xbf16>
    %105 = vector.shape_cast %104 : vector<1x8x32xbf16> to vector<8x32xbf16>
    %cst_49 = arith.constant dense<0.000000e+00> : vector<8x256xf32>
    %106 = tpu.matmul %105, %103, %cst_49 {dimension_numbers = #tpu.dot_dimension_numbers<[1], [0], [0], [1], [0, 0, 1, 1], [], []>} : vector<8x32xbf16>, vector<32x256xbf16>, vector<8x256xf32> -> vector<8x256xf32>
    %cst_50 = arith.constant 0.000000e+00 : f32
    %107 = vector.shape_cast %64 : vector<1x256xi1> to vector<1x256xi1>
    %108 = vector.broadcast %107 : vector<1x256xi1> to vector<8x256xi1>
    %109 = vector.broadcast %cst_50 : f32 to vector<8x256xf32>
    %110 = arith.select %108, %106, %109 : vector<8x256xi1>, vector<8x256xf32>
    %111 = arith.addf %102, %110 : vector<8x256xf32>
    %c0_51 = arith.constant 0 : index
    %c143 = arith.constant 143 : index
    %112 = vector.load %arg8[%c0_51, %c143] : memref<32x512xbf16, #tpu.memory_space<vmem>>, vector<32x256xbf16>
    %c6 = arith.constant 6 : index
    %c0_52 = arith.constant 0 : index
    %c0_53 = arith.constant 0 : index
    %113 = vector.load %arg6[%c6, %c0_52, %c0_53] : memref<9x8x32xbf16, #tpu.memory_space<vmem>>, vector<1x8x32xbf16>
    %114 = vector.shape_cast %113 : vector<1x8x32xbf16> to vector<8x32xbf16>
    %cst_54 = arith.constant dense<0.000000e+00> : vector<8x256xf32>
    %115 = tpu.matmul %114, %112, %cst_54 {dimension_numbers = #tpu.dot_dimension_numbers<[1], [0], [0], [1], [0, 0, 1, 1], [], []>} : vector<8x32xbf16>, vector<32x256xbf16>, vector<8x256xf32> -> vector<8x256xf32>
    %cst_55 = arith.constant 0.000000e+00 : f32
    %116 = vector.shape_cast %62 : vector<1x256xi1> to vector<1x256xi1>
    %117 = vector.broadcast %116 : vector<1x256xi1> to vector<8x256xi1>
    %118 = vector.broadcast %cst_55 : f32 to vector<8x256xf32>
    %119 = arith.select %117, %115, %118 : vector<8x256xi1>, vector<8x256xf32>
    %120 = arith.addf %111, %119 : vector<8x256xf32>
    %c0_56 = arith.constant 0 : index
    %c144 = arith.constant 144 : index
    %121 = vector.load %arg8[%c0_56, %c144] : memref<32x512xbf16, #tpu.memory_space<vmem>>, vector<32x256xbf16>
    %c7 = arith.constant 7 : index
    %c0_57 = arith.constant 0 : index
    %c0_58 = arith.constant 0 : index
    %122 = vector.load %arg6[%c7, %c0_57, %c0_58] : memref<9x8x32xbf16, #tpu.memory_space<vmem>>, vector<1x8x32xbf16>
    %123 = vector.shape_cast %122 : vector<1x8x32xbf16> to vector<8x32xbf16>
    %cst_59 = arith.constant dense<0.000000e+00> : vector<8x256xf32>
    %124 = tpu.matmul %123, %121, %cst_59 {dimension_numbers = #tpu.dot_dimension_numbers<[1], [0], [0], [1], [0, 0, 1, 1], [], []>} : vector<8x32xbf16>, vector<32x256xbf16>, vector<8x256xf32> -> vector<8x256xf32>
    %125 = arith.addf %120, %124 : vector<8x256xf32>
    %c0_60 = arith.constant 0 : index
    %c145 = arith.constant 145 : index
    %126 = vector.load %arg8[%c0_60, %c145] : memref<32x512xbf16, #tpu.memory_space<vmem>>, vector<32x256xbf16>
    %c8 = arith.constant 8 : index
    %c0_61 = arith.constant 0 : index
    %c0_62 = arith.constant 0 : index
    %127 = vector.load %arg6[%c8, %c0_61, %c0_62] : memref<9x8x32xbf16, #tpu.memory_space<vmem>>, vector<1x8x32xbf16>
    %128 = vector.shape_cast %127 : vector<1x8x32xbf16> to vector<8x32xbf16>
    %cst_63 = arith.constant dense<0.000000e+00> : vector<8x256xf32>
    %129 = tpu.matmul %128, %126, %cst_63 {dimension_numbers = #tpu.dot_dimension_numbers<[1], [0], [0], [1], [0, 0, 1, 1], [], []>} : vector<8x32xbf16>, vector<32x256xbf16>, vector<8x256xf32> -> vector<8x256xf32>
    %cst_64 = arith.constant 0.000000e+00 : f32
    %130 = vector.shape_cast %64 : vector<1x256xi1> to vector<1x256xi1>
    %131 = vector.broadcast %130 : vector<1x256xi1> to vector<8x256xi1>
    %132 = vector.broadcast %cst_64 : f32 to vector<8x256xf32>
    %133 = arith.select %131, %129, %132 : vector<8x256xi1>, vector<8x256xf32>
    %134 = arith.addf %125, %133 : vector<8x256xf32>
    %c0_65 = arith.constant 0 : index
    %c0_66 = arith.constant 0 : index
    %c0_67 = arith.constant 0 : index
    %135 = vector.load %arg7[%c0_65, %c0_66, %c0_67] : memref<1x8x256xf32, #tpu.memory_space<vmem>>, vector<1x8x256xf32>
    %136 = vector.shape_cast %135 : vector<1x8x256xf32> to vector<8x256xf32>
    %137 = vector.shape_cast %134 : vector<8x256xf32> to vector<1x8x256xf32>
    tpu.vector_store %arg7[%c0_65, %c0_66, %c0_67], %137 {strides = array<i32>} : memref<1x8x256xf32, #tpu.memory_space<vmem>>, vector<1x8x256xf32>,
    return
  }
  func.func @transform_0(%arg0: i32) -> (i32, i32, i32) {
    %c0_i32 = arith.constant 0 : i32
    %c0_i32_0 = arith.constant 0 : i32
    %c0_i32_1 = arith.constant 0 : i32
    return %arg0, %c0_i32, %c0_i32_0 : i32, i32, i32
  }
  func.func @transform_1(%arg0: i32) -> (i32, i32) {
    %c0_i32 = arith.constant 0 : i32
    %c0_i32_0 = arith.constant 0 : i32
    %c0_i32_1 = arith.constant 0 : i32
    return %c0_i32, %c0_i32_0 : i32, i32
  }
  func.func @transform_2(%arg0: i32) -> (i32, i32) {
    %c0_i32 = arith.constant 0 : i32
    %c0_i32_0 = arith.constant 0 : i32
    %c0_i32_1 = arith.constant 0 : i32
    return %c0_i32, %c0_i32_0 : i32, i32
  }
  func.func @transform_3(%arg0: i32) -> (i32, i32) {
    %c0_i32 = arith.constant 0 : i32
    %c0_i32_0 = arith.constant 0 : i32
    %c0_i32_1 = arith.constant 0 : i32
    return %c0_i32, %c0_i32_0 : i32, i32
  }
  func.func @transform_4(%arg0: i32) -> (i32, i32) {
    %c0_i32 = arith.constant 0 : i32
    %c0_i32_0 = arith.constant 0 : i32
    %c0_i32_1 = arith.constant 0 : i32
    return %c0_i32, %c0_i32_0 : i32, i32
  }
  func.func @transform_5(%arg0: i32) -> (i32, i32, i32) {
    %c0_i32 = arith.constant 0 : i32
    %c0_i32_0 = arith.constant 0 : i32
    %c0_i32_1 = arith.constant 0 : i32
    %c0_i32_2 = arith.constant 0 : i32
    return %c0_i32, %c0_i32_0, %c0_i32_1 : i32, i32, i32
  }
  func.func @transform_6(%arg0: i32) -> (i32, i32, i32) {
    %c0_i32 = arith.constant 0 : i32
    %c0_i32_0 = arith.constant 0 : i32
    %c0_i32_1 = arith.constant 0 : i32
    return %arg0, %c0_i32, %c0_i32_0 : i32, i32, i32
  }
}

</mosaic_0001>

<llo_original>
// kernel: dense_layer_forward.1
$region0: #{dense_layer_forward.1}
  #allocation0 [shape = 'u32[]', space=smem, size = 0x4, offset = 0x4, fixed_abs, tag = 'smem constant byte address 0x4 - core index']
  #allocation1 [shape = 'u32[144,128]{1,0:T(1,128)}', space=vmem, size = 0x12000, scoped, tag = 'internal scratch']
  #allocation2 [shape = 'bf16[32,512]{1,0:T(8,128)(2,1)}', space=vmem, size = 0x8000, scoped, tag = 'scratch operand']
  %s0 = inlined_call_operand.vmem [shape: f32[2,4,256], index: 0, kind: input, shape index: {}]
  %s1 = inlined_call_operand.vmem [shape: f32[4,1], index: 1, kind: input, shape index: {}]
  %s2 = inlined_call_operand.vmem [shape: f32[4,1], index: 2, kind: input, shape index: {}]
  %s3 = inlined_call_operand.vmem [shape: f32[32,4], index: 3, kind: input, shape index: {}]
  %s4 = inlined_call_operand.vmem [shape: f32[32,1], index: 4, kind: input, shape index: {}]
  %s5 = inlined_call_operand.vmem [shape: bf16[9,8,32], index: 5, kind: input, shape index: {}]
  %s6 = inlined_call_operand.vmem [shape: f32[2,8,256], index: 6, kind: output, shape index: {}]
  %s7 = sld [smem:[#allocation0]]
  $region57: #{dense_layer_forward.1} parent=0
    _
  %s9 = ssub.s32 1, %s7
  %s10 = scalar_select 0, %s9, %s7
  loop: start=0, step=1, limit=4
  $region2: #{dense_layer_forward.1} parent=0 // loop_pre_header
    _
  $region3: #{dense_layer_forward.1} parent=0 // loop_header
    %s12 = sphi 0, %s16
    %p13 = scmp.ge.s32.totalorder %s12, 4
    %s22 = sphi 0, %s24
    %s25 = sphi 0, %s22
    %s26 = sphi 0, %s25
    %s42 = sphi 0, %s26
    %s46 = sphi 0, %s46
    %s48 = sphi 0, %s46
    %s49 = sphi 0, %s48
    %s63 = sphi 0, %s49
    %s67 = sphi 0, %s67
    %s69 = sphi 0, %s67
    %s70 = sphi 0, %s69
    %s84 = sphi 0, %s70
    %s88 = sphi 0, %s88
    %s90 = sphi 0, %s88
    %s91 = sphi 0, %s90
    %s105 = sphi 0, %s91
    %s109 = sphi 0, %s109
    %s111 = sphi 0, %s109
    %s112 = sphi 0, %s111
    %s126 = sphi 0, %s112
    %s130 = sphi 0, %s130
    %s132 = sphi 0, %s130
    %s133 = sphi 0, %s132
    %s147 = sphi 0, %s133
    %s153 = sphi 0, %s155
    %s156 = sphi 0, %s153
    %s157 = sphi 0, %s156
    %s173 = sphi 0, %s157
  $region4: #{dense_layer_forward.1} parent=0 // loop_header_branch
    %15 = sbr.rel (%p13) target = $region8
  $region5: #{dense_layer_forward.1} parent=0 // loop_body
    %s17 = ssub.s32 %s12, 1
    %s18 = ssub.s32 %s12, 2
    %s19 = sadd.s32 %s12, 1
    %s20 = ssub.s32 %s12, %s19
    %p21 = scmp.eq.s32.totalorder %s20, 0
    %s23 = sadd.s32 %s22, 1
    %s24 = scalar_select %p21, %s22, %s23
    %p27 = pneg %p21
    %p28 = scmp.eq.s32.totalorder %s12, 1
    %p29 = por %p27, %p28
    %p30 = scmp.ne.s32.totalorder %s22, %s25
    %p31 = scmp.eq.s32.totalorder %s12, 0
    %p32 = por %p30, %p31
    %p33 = scmp.ne.s32.totalorder %s22, %s25
    %p34 = scmp.eq.s32.totalorder %s17, 1
    %p35 = por %p33, %p34
    %p36 = scmp.ne.s32.totalorder %s25, %s26
    %p37 = scmp.eq.s32.totalorder %s17, 0
    %p38 = por %p36, %p37
    %p39 = scmp.ne.s32.totalorder %s25, %s26
    %p40 = scmp.eq.s32.totalorder %s18, 1
    %p41 = por %p39, %p40
    %p43 = scmp.ne.s32.totalorder %s26, %s42
    %p44 = scmp.eq.s32.totalorder %s18, 0
    %p45 = por %p43, %p44
    %s47 = sadd.s32 %s46, 1
    %p50 = scmp.eq.s32.totalorder %s12, 1
    %p51 = scmp.ne.s32.totalorder %s46, %s48
    %p52 = scmp.eq.s32.totalorder %s12, 0
    %p53 = por %p51, %p52
    %p54 = scmp.ne.s32.totalorder %s46, %s48
    %p55 = scmp.eq.s32.totalorder %s17, 1
    %p56 = por %p54, %p55
    %p57 = scmp.ne.s32.totalorder %s48, %s49
    %p58 = scmp.eq.s32.totalorder %s17, 0
    %p59 = por %p57, %p58
    %p60 = scmp.ne.s32.totalorder %s48, %s49
    %p61 = scmp.eq.s32.totalorder %s18, 1
    %p62 = por %p60, %p61
    %p64 = scmp.ne.s32.totalorder %s49, %s63
    %p65 = scmp.eq.s32.totalorder %s18, 0
    %p66 = por %p64, %p65
    %s68 = sadd.s32 %s67, 1
    %p71 = scmp.eq.s32.totalorder %s12, 1
    %p72 = scmp.ne.s32.totalorder %s67, %s69
    %p73 = scmp.eq.s32.totalorder %s12, 0
    %p74 = por %p72, %p73
    %p75 = scmp.ne.s32.totalorder %s67, %s69
    %p76 = scmp.eq.s32.totalorder %s17, 1
    %p77 = por %p75, %p76
    %p78 = scmp.ne.s32.totalorder %s69, %s70
    %p79 = scmp.eq.s32.totalorder %s17, 0
    %p80 = por %p78, %p79
    %p81 = scmp.ne.s32.totalorder %s69, %s70
    %p82 = scmp.eq.s32.totalorder %s18, 1
    %p83 = por %p81, %p82
    %p85 = scmp.ne.s32.totalorder %s70, %s84
    %p86 = scmp.eq.s32.totalorder %s18, 0
    %p87 = por %p85, %p86
    %s89 = sadd.s32 %s88, 1
    %p92 = scmp.eq.s32.totalorder %s12, 1
    %p93 = scmp.ne.s32.totalorder %s88, %s90
    %p94 = scmp.eq.s32.totalorder %s12, 0
    %p95 = por %p93, %p94
    %p96 = scmp.ne.s32.totalorder %s88, %s90
    %p97 = scmp.eq.s32.totalorder %s17, 1
    %p98 = por %p96, %p97
    %p99 = scmp.ne.s32.totalorder %s90, %s91
    %p100 = scmp.eq.s32.totalorder %s17, 0
    %p101 = por %p99, %p100
    %p102 = scmp.ne.s32.totalorder %s90, %s91
    %p103 = scmp.eq.s32.totalorder %s18, 1
    %p104 = por %p102, %p103
    %p106 = scmp.ne.s32.totalorder %s91, %s105
    %p107 = scmp.eq.s32.totalorder %s18, 0
    %p108 = por %p106, %p107
    %s110 = sadd.s32 %s109, 1
    %p113 = scmp.eq.s32.totalorder %s12, 1
    %p114 = scmp.ne.s32.totalorder %s109, %s111
    %p115 = scmp.eq.s32.totalorder %s12, 0
    %p116 = por %p114, %p115
    %p117 = scmp.ne.s32.totalorder %s109, %s111
    %p118 = scmp.eq.s32.totalorder %s17, 1
    %p119 = por %p117, %p118
    %p120 = scmp.ne.s32.totalorder %s111, %s112
    %p121 = scmp.eq.s32.totalorder %s17, 0
    %p122 = por %p120, %p121
    %p123 = scmp.ne.s32.totalorder %s111, %s112
    %p124 = scmp.eq.s32.totalorder %s18, 1
    %p125 = por %p123, %p124
    %p127 = scmp.ne.s32.totalorder %s112, %s126
    %p128 = scmp.eq.s32.totalorder %s18, 0
    %p129 = por %p127, %p128
    %s131 = sadd.s32 %s130, 1
    %p134 = scmp.eq.s32.totalorder %s12, 1
    %p135 = scmp.ne.s32.totalorder %s130, %s132
    %p136 = scmp.eq.s32.totalorder %s12, 0
    %p137 = por %p135, %p136
    %p138 = scmp.ne.s32.totalorder %s130, %s132
    %p139 = scmp.eq.s32.totalorder %s17, 1
    %p140 = por %p138, %p139
    %p141 = scmp.ne.s32.totalorder %s132, %s133
    %p142 = scmp.eq.s32.totalorder %s17, 0
    %p143 = por %p141, %p142
    %p144 = scmp.ne.s32.totalorder %s132, %s133
    %p145 = scmp.eq.s32.totalorder %s18, 1
    %p146 = por %p144, %p145
    %p148 = scmp.ne.s32.totalorder %s133, %s147
    %p149 = scmp.eq.s32.totalorder %s18, 0
    %p150 = por %p148, %p149
    %s151 = ssub.s32 %s12, %s19
    %p152 = scmp.eq.s32.totalorder %s151, 0
    %s154 = sadd.s32 %s153, 1
    %s155 = scalar_select %p152, %s153, %s154
    %p158 = pneg %p152
    %p159 = scmp.eq.s32.totalorder %s12, 1
    %p160 = por %p158, %p159
    %p161 = scmp.ne.s32.totalorder %s153, %s156
    %p162 = scmp.eq.s32.totalorder %s12, 0
    %p163 = por %p161, %p162
    %p164 = scmp.ne.s32.totalorder %s153, %s156
    %p165 = scmp.eq.s32.totalorder %s17, 1
    %p166 = por %p164, %p165
    %p167 = scmp.ne.s32.totalorder %s156, %s157
    %p168 = scmp.eq.s32.totalorder %s17, 0
    %p169 = por %p167, %p168
    %p170 = scmp.ne.s32.totalorder %s156, %s157
    %p171 = scmp.eq.s32.totalorder %s18, 1
    %p172 = por %p170, %p171
    %p174 = scmp.ne.s32.totalorder %s157, %s173
    %p175 = scmp.eq.s32.totalorder %s18, 0
    %p176 = por %p174, %p175
    %p177 = scmp.le.s32.totalorder 1, %s12
    %p178 = scmp.lt.s32.totalorder %s12, 3
    %p179 = pnand %p177, %p178
    %p180 = pneg %p179
    // Predicated region
    $region9: #{dense_layer_forward.1} parent=5 // pred_check
      _
    $region10: #{dense_layer_forward.1} parent=5 // pred_check_branch
      %182 = sbr.rel (%p179) target = $region12
    $region11: #{dense_layer_forward.1} parent=5 // pred_region
      %s183 = ssub.s32 %s12, 1
      // Predicated region
      $region13: #{dense_layer_forward.1} parent=11 // pred_check
        %p184 = pneg %p59
      $region14: #{dense_layer_forward.1} parent=11 // pred_check_branch
        %186 = sbr.rel (%p184) target = $region16
      $region15: #{dense_layer_forward.1} parent=11 // pred_region
        _
      $region16: #{dense_layer_forward.1} parent=11 // pred_fallthru
        _
      // Predicated region
      $region17: #{dense_layer_forward.1} parent=11 // pred_check
        %p187 = pneg %p80
      $region18: #{dense_layer_forward.1} parent=11 // pred_check_branch
        %189 = sbr.rel (%p187) target = $region20
      $region19: #{dense_layer_forward.1} parent=11 // pred_region
        _
      $region20: #{dense_layer_forward.1} parent=11 // pred_fallthru
        _
      // Predicated region
      $region21: #{dense_layer_forward.1} parent=11 // pred_check
        %p190 = pneg %p101
      $region22: #{dense_layer_forward.1} parent=11 // pred_check_branch
        %192 = sbr.rel (%p190) target = $region24
      $region23: #{dense_layer_forward.1} parent=11 // pred_region
        _
      $region24: #{dense_layer_forward.1} parent=11 // pred_fallthru
        _
      // Predicated region
      $region25: #{dense_layer_forward.1} parent=11 // pred_check
        %p193 = pneg %p122
      $region26: #{dense_layer_forward.1} parent=11 // pred_check_branch
        %195 = sbr.rel (%p193) target = $region28
      $region27: #{dense_layer_forward.1} parent=11 // pred_region
        _
      $region28: #{dense_layer_forward.1} parent=11 // pred_fallthru
        _
      // Predicated region
      $region29: #{dense_layer_forward.1} parent=11 // pred_check
        %p196 = pneg %p143
      $region30: #{dense_layer_forward.1} parent=11 // pred_check_branch
        %198 = sbr.rel (%p196) target = $region32
      $region31: #{dense_layer_forward.1} parent=11 // pred_region
        _
      $region32: #{dense_layer_forward.1} parent=11 // pred_fallthru
        _
    $region12: #{dense_layer_forward.1} parent=5 // pred_fallthru
      _
    %p199 = scmp.lt.s32.totalorder %s12, 2
    // Predicated region
    $region33: #{dense_layer_forward.1} parent=5 // pred_check
      %p200 = pneg %p199
    $region34: #{dense_layer_forward.1} parent=5 // pred_check_branch
      %202 = sbr.rel (%p200) target = $region36
    $region35: #{dense_layer_forward.1} parent=5 // pred_region
      // Predicated region
      $region37: #{dense_layer_forward.1} parent=35 // pred_check
        %p203 = pneg %p32
      $region38: #{dense_layer_forward.1} parent=35 // pred_check_branch
        %205 = sbr.rel (%p203) target = $region40
      $region39: #{dense_layer_forward.1} parent=35 // pred_region
        %p206 = scmp.lt.s32.totalorder %s12, 1
        %s207 = scalar_select %p206, %s12, 1
        %s208 = smul.addr %s207, 2
        %s209 = smul.addr %s208, 4
        %s210 = scalar_lea.vmem %s0, %s209
      $region40: #{dense_layer_forward.1} parent=35 // pred_fallthru
        _
    $region36: #{dense_layer_forward.1} parent=5 // pred_fallthru
      _
    %p211 = scmp.le.s32.totalorder 1, %s12
    %p212 = scmp.lt.s32.totalorder %s12, 3
    %p213 = pnand %p211, %p212
    %p214 = pneg %p213
    // Predicated region
    $region41: #{dense_layer_forward.1} parent=5 // pred_check
      _
    $region42: #{dense_layer_forward.1} parent=5 // pred_check_branch
      %216 = sbr.rel (%p213) target = $region44
    $region43: #{dense_layer_forward.1} parent=5 // pred_region
      %s217 = ssub.s32 %s12, 1
      %p218 = scmp.lt.s32.totalorder %s17, 1
      %s219 = scalar_select %p218, %s17, 1
      %s220 = smul.addr %s219, 2
      %s221 = smul.addr %s220, 4
      %s222 = scalar_lea.vmem %s0, %s221
      %p223 = pneg %p38
      %p224 = pneg %p35
      %p225 = pneg %p59
      %p226 = pneg %p56
      %p227 = pneg %p80
      %p228 = pneg %p77
      %p229 = pneg %p101
      %p230 = pneg %p98
      %p231 = pneg %p122
      %p232 = pneg %p119
      %p233 = pneg %p143
      %p234 = pneg %p140
      %p235 = pneg %p169
      %p236 = pneg %p166
      %p237 = scmp.lt.s32.totalorder %s17, 1
      %s238 = scalar_select %p237, %s17, 1
      %s239 = smul.addr %s238, 2
      %s240 = smul.addr %s239, 8
      %s241 = scalar_lea.vmem %s6, %s240
      %p242 = scmp.lt.s32.totalorder %s17, 1
      %s243 = scalar_select %p242, %s17, 1
      %s244 = smul.addr %s243, 2
      %s245 = smul.addr %s244, 4
      %s246 = scalar_lea.vmem %s0, %s245
      %p247 = scmp.lt.s32.totalorder %s17, 1
      %s248 = scalar_select %p247, %s17, 1
      %s249 = smul.addr %s248, 2
      %s250 = smul.addr %s249, 8
      %s251 = scalar_lea.vmem %s6, %s250
      %v253 = vld [vmem:[%s246] sm:$0xff]
      %v254 = vld [vmem:[%s1] sm:$0xf]
      %256 = vset.pattern.permute.xlu0 0
      %257 = vperm.xlu0 %256, %v254
      %v258 = vpop.permute.xlu0 %257
      %v260 = vunpack.c.l.s4 839922192
      %v261 = vunpack.c.0.s8 %v260
      %v262 = vlaneseq
      %v263 = vshrl.u32 %v262, 7
      %v264 = vsub.s32 %v261, %v263
      %v265 = vrot.slane %v258, %v264
      %v267 = vmul.f32 %v253, %v265
      %v268 = vld [vmem:[%s2] sm:$0xf]
      %270 = vset.pattern.permute.xlu0 0
      %271 = vperm.xlu0 %270, %v268
      %v272 = vpop.permute.xlu0 %271
      %v274 = vunpack.c.l.s4 839922192
      %v275 = vunpack.c.0.s8 %v274
      %v276 = vlaneseq
      %v277 = vshrl.u32 %v276, 7
      %v278 = vsub.s32 %v275, %v277
      %v279 = vrot.slane %v272, %v278
      %v281 = vadd.f32 %v267, %v279
      %v282 = vmax.f32 %v281, 0.0
      %v283 = vld [vmem:[%s3] sm:$0xff]
      %v284 = vld [vmem:[%s3 + $0x8] sm:$0xff]
      %v285 = vld [vmem:[%s3 + $0x10] sm:$0xff]
      %v286 = vld [vmem:[%s3 + $0x18] sm:$0xff]
      %288 = vset.pattern.permute.xlu0 0
      %289 = vperm.xlu0 %288, %v283
      %v290 = vpop.permute.xlu0 %289
      %293 = vset.pattern.permute.xlu0 0
      %294 = vperm.xlu0 %293, %v284
      %v295 = vpop.permute.xlu0 %294
      %298 = vset.pattern.permute.xlu0 0
      %299 = vperm.xlu0 %298, %v285
      %v300 = vpop.permute.xlu0 %299
      %303 = vset.pattern.permute.xlu0 0
      %304 = vperm.xlu0 %303, %v286
      %v305 = vpop.permute.xlu0 %304
      %v308 = vlaneseq
      %v309 = vshrl.u32 %v308, 7
      %v310 = vsub.s32 0, %v309
      %v311 = vrot.slane %v282, %v310
      %v312 = vlaneseq
      %v313 = vshrl.u32 %v312, 7
      %v314 = vsub.s32 4, %v313
      %v315 = vrot.slane %v282, %v314
      %v318 = vlaneseq
      %v319 = vshrl.u32 %v318, 7
      %v320 = vsub.s32 0, %v319
      %v321 = vrot.slane %v311, %v320
      %v322 = vlaneseq
      %v323 = vshrl.u32 %v322, 7
      %v324 = vsub.s32 0, %v323
      %v325 = vrot.slane %v315, %v324
      %v326 = vmul.f32 %v290, %v321
      %v327 = vmul.f32 %v290, %v325
      %v328 = vmul.f32 %v295, %v321
      %v329 = vmul.f32 %v295, %v325
      %v330 = vmul.f32 %v300, %v321
      %v331 = vmul.f32 %v300, %v325
      %v332 = vmul.f32 %v305, %v321
      %v333 = vmul.f32 %v305, %v325
      %334 = vset.pattern.permute.xlu0 1
      %335 = vperm.xlu0 %334, %v283
      %v336 = vpop.permute.xlu0 %335
      %338 = vset.pattern.permute.xlu0 1
      %339 = vperm.xlu0 %338, %v284
      %v340 = vpop.permute.xlu0 %339
      %342 = vset.pattern.permute.xlu0 1
      %343 = vperm.xlu0 %342, %v285
      %v344 = vpop.permute.xlu0 %343
      %346 = vset.pattern.permute.xlu0 1
      %347 = vperm.xlu0 %346, %v286
      %v348 = vpop.permute.xlu0 %347
      %v350 = vlaneseq
      %v351 = vshrl.u32 %v350, 7
      %v352 = vsub.s32 1, %v351
      %v353 = vrot.slane %v282, %v352
      %v354 = vlaneseq
      %v355 = vshrl.u32 %v354, 7
      %v356 = vsub.s32 5, %v355
      %v357 = vrot.slane %v282, %v356
      %v360 = vlaneseq
      %v361 = vshrl.u32 %v360, 7
      %v362 = vsub.s32 1, %v361
      %v363 = vrot.slane %v353, %v362
      %v364 = vlaneseq
      %v365 = vshrl.u32 %v364, 7
      %v366 = vsub.s32 1, %v365
      %v367 = vrot.slane %v357, %v366
      %v368 = vmul.f32 %v336, %v363
      %v369 = vmul.f32 %v336, %v367
      %v370 = vmul.f32 %v340, %v363
      %v371 = vmul.f32 %v340, %v367
      %v372 = vmul.f32 %v344, %v363
      %v373 = vmul.f32 %v344, %v367
      %v374 = vmul.f32 %v348, %v363
      %v375 = vmul.f32 %v348, %v367
      %v376 = vadd.f32 %v326, %v368
      %v377 = vadd.f32 %v327, %v369
      %v378 = vadd.f32 %v328, %v370
      %v379 = vadd.f32 %v329, %v371
      %v380 = vadd.f32 %v330, %v372
      %v381 = vadd.f32 %v331, %v373
      %v382 = vadd.f32 %v332, %v374
      %v383 = vadd.f32 %v333, %v375
      %384 = vset.pattern.permute.xlu0 2
      %385 = vperm.xlu0 %384, %v283
      %v386 = vpop.permute.xlu0 %385
      %388 = vset.pattern.permute.xlu0 2
      %389 = vperm.xlu0 %388, %v284
      %v390 = vpop.permute.xlu0 %389
      %392 = vset.pattern.permute.xlu0 2
      %393 = vperm.xlu0 %392, %v285
      %v394 = vpop.permute.xlu0 %393
      %396 = vset.pattern.permute.xlu0 2
      %397 = vperm.xlu0 %396, %v286
      %v398 = vpop.permute.xlu0 %397
      %v400 = vlaneseq
      %v401 = vshrl.u32 %v400, 7
      %v402 = vsub.s32 2, %v401
      %v403 = vrot.slane %v282, %v402
      %v404 = vlaneseq
      %v405 = vshrl.u32 %v404, 7
      %v406 = vsub.s32 6, %v405
      %v407 = vrot.slane %v282, %v406
      %v410 = vlaneseq
      %v411 = vshrl.u32 %v410, 7
      %v412 = vsub.s32 2, %v411
      %v413 = vrot.slane %v403, %v412
      %v414 = vlaneseq
      %v415 = vshrl.u32 %v414, 7
      %v416 = vsub.s32 2, %v415
      %v417 = vrot.slane %v407, %v416
      %v418 = vmul.f32 %v386, %v413
      %v419 = vmul.f32 %v386, %v417
      %v420 = vmul.f32 %v390, %v413
      %v421 = vmul.f32 %v390, %v417
      %v422 = vmul.f32 %v394, %v413
      %v423 = vmul.f32 %v394, %v417
      %v424 = vmul.f32 %v398, %v413
      %v425 = vmul.f32 %v398, %v417
      %v426 = vadd.f32 %v376, %v418
      %v427 = vadd.f32 %v377, %v419
      %v428 = vadd.f32 %v378, %v420
      %v429 = vadd.f32 %v379, %v421
      %v430 = vadd.f32 %v380, %v422
      %v431 = vadd.f32 %v381, %v423
      %v432 = vadd.f32 %v382, %v424
      %v433 = vadd.f32 %v383, %v425
      %434 = vset.pattern.permute.xlu0 3
      %435 = vperm.xlu0 %434, %v283
      %v436 = vpop.permute.xlu0 %435
      %438 = vset.pattern.permute.xlu0 3
      %439 = vperm.xlu0 %438, %v284
      %v440 = vpop.permute.xlu0 %439
      %442 = vset.pattern.permute.xlu0 3
      %443 = vperm.xlu0 %442, %v285
      %v444 = vpop.permute.xlu0 %443
      %446 = vset.pattern.permute.xlu0 3
      %447 = vperm.xlu0 %446, %v286
      %v448 = vpop.permute.xlu0 %447
      %v450 = vlaneseq
      %v451 = vshrl.u32 %v450, 7
      %v452 = vsub.s32 3, %v451
      %v453 = vrot.slane %v282, %v452
      %v454 = vlaneseq
      %v455 = vshrl.u32 %v454, 7
      %v456 = vsub.s32 7, %v455
      %v457 = vrot.slane %v282, %v456
      %v460 = vlaneseq
      %v461 = vshrl.u32 %v460, 7
      %v462 = vsub.s32 3, %v461
      %v463 = vrot.slane %v453, %v462
      %v464 = vlaneseq
      %v465 = vshrl.u32 %v464, 7
      %v466 = vsub.s32 3, %v465
      %v467 = vrot.slane %v457, %v466
      %v468 = vmul.f32 %v436, %v463
      %v469 = vmul.f32 %v436, %v467
      %v470 = vmul.f32 %v440, %v463
      %v471 = vmul.f32 %v440, %v467
      %v472 = vmul.f32 %v444, %v463
      %v473 = vmul.f32 %v444, %v467
      %v474 = vmul.f32 %v448, %v463
      %v475 = vmul.f32 %v448, %v467
      %v476 = vadd.f32 %v426, %v468
      %v477 = vadd.f32 %v427, %v469
      %v478 = vadd.f32 %v428, %v470
      %v479 = vadd.f32 %v429, %v471
      %v480 = vadd.f32 %v430, %v472
      %v481 = vadd.f32 %v431, %v473
      %v482 = vadd.f32 %v432, %v474
      %v483 = vadd.f32 %v433, %v475
      %v484 = vld [vmem:[%s4] sm:$0xff]
      %v485 = vld [vmem:[%s4 + $0x8] sm:$0xff]
      %v486 = vld [vmem:[%s4 + $0x10] sm:$0xff]
      %v487 = vld [vmem:[%s4 + $0x18] sm:$0xff]
      %489 = vset.pattern.permute.xlu0 0
      %490 = vperm.xlu0 %489, %v484
      %v491 = vpop.permute.xlu0 %490
      %494 = vset.pattern.permute.xlu0 0
      %495 = vperm.xlu0 %494, %v485
      %v496 = vpop.permute.xlu0 %495
      %499 = vset.pattern.permute.xlu0 0
      %500 = vperm.xlu0 %499, %v486
      %v501 = vpop.permute.xlu0 %500
      %504 = vset.pattern.permute.xlu0 0
      %505 = vperm.xlu0 %504, %v487
      %v506 = vpop.permute.xlu0 %505
      %v508 = vadd.f32 %v476, %v491
      %v509 = vadd.f32 %v477, %v491
      %v510 = vadd.f32 %v478, %v496
      %v511 = vadd.f32 %v479, %v496
      %v512 = vadd.f32 %v480, %v501
      %v513 = vadd.f32 %v481, %v501
      %v514 = vadd.f32 %v482, %v506
      %v515 = vadd.f32 %v483, %v506
      %v516 = vmax.f32 %v508, 0.0
      %v517 = vmax.f32 %v509, 0.0
      %v518 = vmax.f32 %v510, 0.0
      %v519 = vmax.f32 %v511, 0.0
      %v520 = vmax.f32 %v512, 0.0
      %v521 = vmax.f32 %v513, 0.0
      %v522 = vmax.f32 %v514, 0.0
      %v523 = vmax.f32 %v515, 0.0
      %vm524 = vcmask 1044344
      %525 = vst.msk [vmem:[#allocation2] sm:$0xf] %vm524, 0
      %526 = vst.msk [vmem:[#allocation2 + $0x10] sm:$0xf] %vm524, 0
      %527 = vst.msk [vmem:[#allocation2 + $0x20] sm:$0xf] %vm524, 0
      %528 = vst.msk [vmem:[#allocation2 + $0x30] sm:$0xf] %vm524, 0
      %vm529 = vcmask 134144
      %530 = vst.msk [vmem:[#allocation2 + $0xc] sm:$0xf] %vm529, 0
      %531 = vst.msk [vmem:[#allocation2 + $0x1c] sm:$0xf] %vm529, 0
      %532 = vst.msk [vmem:[#allocation2 + $0x2c] sm:$0xf] %vm529, 0
      %533 = vst.msk [vmem:[#allocation2 + $0x3c] sm:$0xf] %vm529, 0
      %v534 = vpack.c.bf16 %v518, %v516
      %v535 = vpack.c.bf16 %v519, %v517
      %v536 = vpack.c.bf16 %v522, %v520
      %v537 = vpack.c.bf16 %v523, %v521
      %v542 = vunpack.c.l.b16 %v534
      %v543 = vunpack.c.l.b16 %v535
      %v544 = vunpack.c.h.b16 %v534
      %v545 = vunpack.c.h.b16 %v535
      %v546 = vunpack.c.l.b16 %v536
      %v547 = vunpack.c.l.b16 %v537
      %v548 = vunpack.c.h.b16 %v536
      %v549 = vunpack.c.h.b16 %v537
      %v550 = vpack.c.b16 %v543, %v542
      %v551 = vpack.c.b16 %v545, %v544
      %v552 = vpack.c.b16 %v547, %v546
      %v553 = vpack.c.b16 %v549, %v548
      %558 = vst [vmem:[#allocation2 + $0x4] sm:$0xff] %v550
      %559 = vst [vmem:[#allocation2 + $0x14] sm:$0xff] %v551
      %560 = vst [vmem:[#allocation2 + $0x24] sm:$0xff] %v552
      %561 = vst [vmem:[#allocation2 + $0x34] sm:$0xff] %v553
      %v562 = vlaneseq
      %v563 = vand.u32 %v562, 127
      %v564 = vadd.s32 %v563, 128
      %vm565 = vcmp.lt.s32.totalorder %v563, 0
      %v566 = vsub.s32 0, %v563
      %v567 = vsel %vm565, %v566, %v563
      %v568 = vshrl.u32 %v567, 4
      %v569 = vand.u32 %v567, 15
      %v570 = vsub.s32 0, %v569
      %v571 = vsel %vm565, %v570, %v569
      %vm572 = vcmp.lt.s32.totalorder %v564, 0
      %v573 = vsub.s32 0, %v564
      %v574 = vsel %vm572, %v573, %v564
      %v575 = vshrl.u32 %v574, 4
      %v576 = vand.u32 %v574, 15
      %v577 = vsub.s32 0, %v576
      %v578 = vsel %vm572, %v577, %v576
      %vm579 = vcmp.ne.s32.totalorder %v571, 0
      %vm580 = vcmp.ne.s32.totalorder %v578, 0
      %vm581 = vcmp.lt.s32.totalorder %v571, 0
      %vm582 = vcmp.lt.s32.totalorder %v578, 0
      %vm583 = vmand %vm581, %vm579
      %vm584 = vmand %vm582, %vm580
      %v585 = vadd.s32 %v571, 16
      %v586 = vadd.s32 %v578, 16
      %v587 = vsel %vm583, %v585, %v571
      %v588 = vsel %vm584, %v586, %v578
      %vm589 = vcmp.ge.s32.totalorder %v587, 1
      %vm590 = vcmp.ge.s32.totalorder %v588, 1
      %vm591 = vcmp.le.s32.totalorder %v587, 14
      %vm592 = vcmp.le.s32.totalorder %v588, 14
      %v593 = vld [vmem:[#allocation2] sm:$0xff]
      %v594 = vld [vmem:[#allocation2 + $0x8] sm:$0xf]
      %v595 = vld [vmem:[#allocation2 + $0x10] sm:$0xff]
      %v596 = vld [vmem:[#allocation2 + $0x18] sm:$0xf]
      %v597 = vld [vmem:[#allocation2 + $0x20] sm:$0xff]
      %v598 = vld [vmem:[#allocation2 + $0x28] sm:$0xf]
      %v599 = vld [vmem:[#allocation2 + $0x30] sm:$0xff]
      %v600 = vld [vmem:[#allocation2 + $0x38] sm:$0xf]
      %v601 = vld [vmem:[%s5] sm:$0xf]
      %v610 = vunpack.c.l.b16 %v593
      %v611 = vunpack.c.h.b16 %v593
      %v612 = vunpack.c.l.b16 %v594
      %v613 = vunpack.c.l.b16 %v595
      %v614 = vunpack.c.h.b16 %v595
      %v615 = vunpack.c.l.b16 %v596
      %v616 = vunpack.c.l.b16 %v597
      %v617 = vunpack.c.h.b16 %v597
      %v618 = vunpack.c.l.b16 %v598
      %v619 = vunpack.c.l.b16 %v599
      %v620 = vunpack.c.h.b16 %v599
      %v621 = vunpack.c.l.b16 %v600
      %v622 = vpack.c.b16 %v613, %v610
      %v623 = vpack.c.b16 %v614, %v611
      %v624 = vpack.c.b16 %v615, %v612
      %v625 = vpack.c.b16 %v619, %v616
      %v626 = vpack.c.b16 %v620, %v617
      %v627 = vpack.c.b16 %v621, %v618
      %628 = vrot.lane.b32.xlu0 %v622, 17
      %v629 = vpop.permute.xlu0 %628
      %630 = vrot.lane.b32.xlu0 %v623, 17
      %v631 = vpop.permute.xlu0 %630
      %632 = vrot.lane.b32.xlu0 %v624, 17
      %v633 = vpop.permute.xlu0 %632
      %634 = vrot.lane.b32.xlu0 %v625, 17
      %v635 = vpop.permute.xlu0 %634
      %636 = vrot.lane.b32.xlu0 %v626, 17
      %v637 = vpop.permute.xlu0 %636
      %638 = vrot.lane.b32.xlu0 %v627, 17
      %v639 = vpop.permute.xlu0 %638
      %vm640 = vcmask 138240
      %v641 = vsel %vm640, %v629, %v631
      %v642 = vsel %vm640, %v631, %v633
      %v643 = vsel %vm640, %v635, %v637
      %v644 = vsel %vm640, %v637, %v639
      %vm649 = vcmask 261120
      %v651 = vsel %vm649, %v601, 0
      %653 = vmatprep.subr.bf16.mxu0 0
      %654 = vmatpush1.bf16.msra.mxu0 0
      %655 = vmatprep.subr.bf16.mxu0 0
      %656 = vmatpush1.bf16.msra.mxu0 0
      %657 = vmatprep.subr.bf16.mxu0 0
      %658 = vmatpush1.bf16.msra.mxu0 0
      %659 = vmatprep.subr.bf16.mxu0 0
      %660 = vmatpush1.bf16.msra.mxu0 0
      %661 = vmatprep.subr.bf16.mxu0 0
      %662 = vmatpush1.bf16.msra.mxu0 0
      %663 = vmatprep.subr.bf16.mxu0 0
      %664 = vmatpush1.bf16.msra.mxu0 0
      %665 = vmatprep.subr.bf16.mxu0 %v644
      %666 = vmatpush1.bf16.msra.mxu0 %v643
      %667 = vmatprep.subr.bf16.mxu0 %v642
      %668 = vmatpush1.bf16.msra.mxu0 %v641
      %669 = vmatprep.subr.bf16.mxu0 0
      %670 = vmatpush2.bf16.msra.mxu0 0
      %671 = vmatprep.subr.bf16.mxu0 0
      %672 = vmatpush2.bf16.msra.mxu0 0
      %673 = vmatprep.subr.bf16.mxu0 0
      %674 = vmatpush2.bf16.msra.mxu0 0
      %675 = vmatprep.subr.bf16.mxu0 0
      %676 = vmatpush2.bf16.msra.mxu0 0
      %677 = vmatprep.subr.bf16.mxu0 0
      %678 = vmatpush2.bf16.msra.mxu0 0
      %679 = vmatprep.subr.bf16.mxu0 0
      %680 = vmatpush2.bf16.msra.mxu0 0
      %681 = vmatprep.subr.bf16.mxu0 0
      %682 = vmatpush2.bf16.msra.mxu0 0
      %683 = vmatprep.subr.bf16.mxu0 0
      %684 = vmatpush2.bf16.msra.mxu0 0
      %685 = vmatprep.mubr.bf16.mxu0 0
      %686 = vmatmul.mubr.bf16.gmra.mxu0 %v651
      %v687 = vpop.f32.mrf.mxu0
      %v688 = vadd.f32 0.0, %v687
      %v689 = vpop.f32.mrf.mxu0
      %v690 = vadd.f32 0.0, %v689
      %v691 = vpop.f32.mrf.mxu0
      %v692 = vpop.f32.mrf.mxu0
      %693 = vdwg.mxu0
      %v694 = vsel %vm589, 1, 0
      %v695 = vsel %vm590, 1, 0
      %vm696 = vcmp.eq.s32.totalorder %v694, 1
      %vm697 = vcmp.eq.s32.totalorder %v695, 1
      %v698 = vsel %vm696, %v688, 0.0
      %v699 = vsel %vm697, %v690, 0.0
      %v700 = vadd.f32 %v698, 0.0
      %v701 = vadd.f32 %v699, 0.0
      %s702 = scalar_lea.vmem %s5, 4
      %v703 = vld [vmem:[%s702] sm:$0xf]
      %704 = vrot.lane.b32.xlu0 %v622, 16
      %v705 = vpop.permute.xlu0 %704
      %706 = vrot.lane.b32.xlu0 %v623, 16
      %v707 = vpop.permute.xlu0 %706
      %708 = vrot.lane.b32.xlu0 %v624, 16
      %v709 = vpop.permute.xlu0 %708
      %710 = vrot.lane.b32.xlu0 %v625, 16
      %v711 = vpop.permute.xlu0 %710
      %712 = vrot.lane.b32.xlu0 %v626, 16
      %v713 = vpop.permute.xlu0 %712
      %714 = vrot.lane.b32.xlu0 %v627, 16
      %v715 = vpop.permute.xlu0 %714
      %vm716 = vcmask 130048
      %v717 = vsel %vm716, %v705, %v707
      %v718 = vsel %vm716, %v707, %v709
      %v719 = vsel %vm716, %v711, %v713
      %v720 = vsel %vm716, %v713, %v715
      %v726 = vsel %vm649, %v703, 0
      %728 = vmatprep.subr.bf16.mxu0 0
      %729 = vmatpush1.bf16.msra.mxu0 0
      %730 = vmatprep.subr.bf16.mxu0 0
      %731 = vmatpush1.bf16.msra.mxu0 0
      %732 = vmatprep.subr.bf16.mxu0 0
      %733 = vmatpush1.bf16.msra.mxu0 0
      %734 = vmatprep.subr.bf16.mxu0 0
      %735 = vmatpush1.bf16.msra.mxu0 0
      %736 = vmatprep.subr.bf16.mxu0 0
      %737 = vmatpush1.bf16.msra.mxu0 0
      %738 = vmatprep.subr.bf16.mxu0 0
      %739 = vmatpush1.bf16.msra.mxu0 0
      %740 = vmatprep.subr.bf16.mxu0 %v720
      %741 = vmatpush1.bf16.msra.mxu0 %v719
      %742 = vmatprep.subr.bf16.mxu0 %v718
      %743 = vmatpush1.bf16.msra.mxu0 %v717
      %744 = vmatprep.subr.bf16.mxu0 0
      %745 = vmatpush2.bf16.msra.mxu0 0
      %746 = vmatprep.subr.bf16.mxu0 0
      %747 = vmatpush2.bf16.msra.mxu0 0
      %748 = vmatprep.subr.bf16.mxu0 0
      %749 = vmatpush2.bf16.msra.mxu0 0
      %750 = vmatprep.subr.bf16.mxu0 0
      %751 = vmatpush2.bf16.msra.mxu0 0
      %752 = vmatprep.subr.bf16.mxu0 0
      %753 = vmatpush2.bf16.msra.mxu0 0
      %754 = vmatprep.subr.bf16.mxu0 0
      %755 = vmatpush2.bf16.msra.mxu0 0
      %756 = vmatprep.subr.bf16.mxu0 0
      %757 = vmatpush2.bf16.msra.mxu0 0
      %758 = vmatprep.subr.bf16.mxu0 0
      %759 = vmatpush2.bf16.msra.mxu0 0
      %760 = vmatprep.mubr.bf16.mxu0 0
      %761 = vmatmul.mubr.bf16.gmra.mxu0 %v726
      %v762 = vpop.f32.mrf.mxu0
      %v763 = vadd.f32 0.0, %v762
      %v764 = vpop.f32.mrf.mxu0
      %v765 = vadd.f32 0.0, %v764
      %v766 = vpop.f32.mrf.mxu0
      %v767 = vpop.f32.mrf.mxu0
      %768 = vdwg.mxu0
      %v769 = vadd.f32 %v700, %v763
      %v770 = vadd.f32 %v701, %v765
      %s771 = scalar_lea.vmem %s5, 8
      %v772 = vld [vmem:[%s771] sm:$0xf]
      %773 = vrot.lane.b32.xlu0 %v622, 15
      %v774 = vpop.permute.xlu0 %773
      %775 = vrot.lane.b32.xlu0 %v623, 15
      %v776 = vpop.permute.xlu0 %775
      %777 = vrot.lane.b32.xlu0 %v624, 15
      %v778 = vpop.permute.xlu0 %777
      %779 = vrot.lane.b32.xlu0 %v625, 15
      %v780 = vpop.permute.xlu0 %779
      %781 = vrot.lane.b32.xlu0 %v626, 15
      %v782 = vpop.permute.xlu0 %781
      %783 = vrot.lane.b32.xlu0 %v627, 15
      %v784 = vpop.permute.xlu0 %783
      %vm785 = vcmask 121856
      %v786 = vsel %vm785, %v774, %v776
      %v787 = vsel %vm785, %v776, %v778
      %v788 = vsel %vm785, %v780, %v782
      %v789 = vsel %vm785, %v782, %v784
      %v795 = vsel %vm649, %v772, 0
      %797 = vmatprep.subr.bf16.mxu0 0
      %798 = vmatpush1.bf16.msra.mxu0 0
      %799 = vmatprep.subr.bf16.mxu0 0
      %800 = vmatpush1.bf16.msra.mxu0 0
      %801 = vmatprep.subr.bf16.mxu0 0
      %802 = vmatpush1.bf16.msra.mxu0 0
      %803 = vmatprep.subr.bf16.mxu0 0
      %804 = vmatpush1.bf16.msra.mxu0 0
      %805 = vmatprep.subr.bf16.mxu0 0
      %806 = vmatpush1.bf16.msra.mxu0 0
      %807 = vmatprep.subr.bf16.mxu0 0
      %808 = vmatpush1.bf16.msra.mxu0 0
      %809 = vmatprep.subr.bf16.mxu0 %v789
      %810 = vmatpush1.bf16.msra.mxu0 %v788
      %811 = vmatprep.subr.bf16.mxu0 %v787
      %812 = vmatpush1.bf16.msra.mxu0 %v786
      %813 = vmatprep.subr.bf16.mxu0 0
      %814 = vmatpush2.bf16.msra.mxu0 0
      %815 = vmatprep.subr.bf16.mxu0 0
      %816 = vmatpush2.bf16.msra.mxu0 0
      %817 = vmatprep.subr.bf16.mxu0 0
      %818 = vmatpush2.bf16.msra.mxu0 0
      %819 = vmatprep.subr.bf16.mxu0 0
      %820 = vmatpush2.bf16.msra.mxu0 0
      %821 = vmatprep.subr.bf16.mxu0 0
      %822 = vmatpush2.bf16.msra.mxu0 0
      %823 = vmatprep.subr.bf16.mxu0 0
      %824 = vmatpush2.bf16.msra.mxu0 0
      %825 = vmatprep.subr.bf16.mxu0 0
      %826 = vmatpush2.bf16.msra.mxu0 0
      %827 = vmatprep.subr.bf16.mxu0 0
      %828 = vmatpush2.bf16.msra.mxu0 0
      %829 = vmatprep.mubr.bf16.mxu0 0
      %830 = vmatmul.mubr.bf16.gmra.mxu0 %v795
      %v831 = vpop.f32.mrf.mxu0
      %v832 = vadd.f32 0.0, %v831
      %v833 = vpop.f32.mrf.mxu0
      %v834 = vadd.f32 0.0, %v833
      %v835 = vpop.f32.mrf.mxu0
      %v836 = vpop.f32.mrf.mxu0
      %837 = vdwg.mxu0
      %v838 = vsel %vm591, 1, 0
      %v839 = vsel %vm592, 1, 0
      %vm840 = vcmp.eq.s32.totalorder %v838, 1
      %vm841 = vcmp.eq.s32.totalorder %v839, 1
      %v842 = vsel %vm840, %v832, 0.0
      %v843 = vsel %vm841, %v834, 0.0
      %v844 = vadd.f32 %v769, %v842
      %v845 = vadd.f32 %v770, %v843
      %s846 = scalar_lea.vmem %s5, 12
      %v847 = vld [vmem:[%s846] sm:$0xf]
      %848 = vrot.lane.b32.xlu0 %v622, 1
      %v849 = vpop.permute.xlu0 %848
      %850 = vrot.lane.b32.xlu0 %v623, 1
      %v851 = vpop.permute.xlu0 %850
      %852 = vrot.lane.b32.xlu0 %v624, 1
      %v853 = vpop.permute.xlu0 %852
      %854 = vrot.lane.b32.xlu0 %v625, 1
      %v855 = vpop.permute.xlu0 %854
      %856 = vrot.lane.b32.xlu0 %v626, 1
      %v857 = vpop.permute.xlu0 %856
      %858 = vrot.lane.b32.xlu0 %v627, 1
      %v859 = vpop.permute.xlu0 %858
      %vm860 = vcmask 7168
      %v861 = vsel %vm860, %v849, %v851
      %v862 = vsel %vm860, %v851, %v853
      %v863 = vsel %vm860, %v855, %v857
      %v864 = vsel %vm860, %v857, %v859
      %v870 = vsel %vm649, %v847, 0
      %872 = vmatprep.subr.bf16.mxu0 0
      %873 = vmatpush1.bf16.msra.mxu0 0
      %874 = vmatprep.subr.bf16.mxu0 0
      %875 = vmatpush1.bf16.msra.mxu0 0
      %876 = vmatprep.subr.bf16.mxu0 0
      %877 = vmatpush1.bf16.msra.mxu0 0
      %878 = vmatprep.subr.bf16.mxu0 0
      %879 = vmatpush1.bf16.msra.mxu0 0
      %880 = vmatprep.subr.bf16.mxu0 0
      %881 = vmatpush1.bf16.msra.mxu0 0
      %882 = vmatprep.subr.bf16.mxu0 0
      %883 = vmatpush1.bf16.msra.mxu0 0
      %884 = vmatprep.subr.bf16.mxu0 %v864
      %885 = vmatpush1.bf16.msra.mxu0 %v863
      %886 = vmatprep.subr.bf16.mxu0 %v862
      %887 = vmatpush1.bf16.msra.mxu0 %v861
      %888 = vmatprep.subr.bf16.mxu0 0
      %889 = vmatpush2.bf16.msra.mxu0 0
      %890 = vmatprep.subr.bf16.mxu0 0
      %891 = vmatpush2.bf16.msra.mxu0 0
      %892 = vmatprep.subr.bf16.mxu0 0
      %893 = vmatpush2.bf16.msra.mxu0 0
      %894 = vmatprep.subr.bf16.mxu0 0
      %895 = vmatpush2.bf16.msra.mxu0 0
      %896 = vmatprep.subr.bf16.mxu0 0
      %897 = vmatpush2.bf16.msra.mxu0 0
      %898 = vmatprep.subr.bf16.mxu0 0
      %899 = vmatpush2.bf16.msra.mxu0 0
      %900 = vmatprep.subr.bf16.mxu0 0
      %901 = vmatpush2.bf16.msra.mxu0 0
      %902 = vmatprep.subr.bf16.mxu0 0
      %903 = vmatpush2.bf16.msra.mxu0 0
      %904 = vmatprep.mubr.bf16.mxu0 0
      %905 = vmatmul.mubr.bf16.gmra.mxu0 %v870
      %v906 = vpop.f32.mrf.mxu0
      %v907 = vadd.f32 0.0, %v906
      %v908 = vpop.f32.mrf.mxu0
      %v909 = vadd.f32 0.0, %v908
      %v910 = vpop.f32.mrf.mxu0
      %v911 = vpop.f32.mrf.mxu0
      %912 = vdwg.mxu0
      %v913 = vsel %vm696, %v907, 0.0
      %v914 = vsel %vm697, %v909, 0.0
      %v915 = vadd.f32 %v844, %v913
      %v916 = vadd.f32 %v845, %v914
      %v917 = vld [vmem:[#allocation2 + $0x4] sm:$0xff]
      %v918 = vld [vmem:[#allocation2 + $0x14] sm:$0xff]
      %v919 = vld [vmem:[#allocation2 + $0x24] sm:$0xff]
      %v920 = vld [vmem:[#allocation2 + $0x34] sm:$0xff]
      %s921 = scalar_lea.vmem %s5, 16
      %v922 = vld [vmem:[%s921] sm:$0xf]
      %v927 = vunpack.c.l.b16 %v917
      %v928 = vunpack.c.h.b16 %v917
      %v929 = vunpack.c.l.b16 %v918
      %v930 = vunpack.c.h.b16 %v918
      %v931 = vunpack.c.l.b16 %v919
      %v932 = vunpack.c.h.b16 %v919
      %v933 = vunpack.c.l.b16 %v920
      %v934 = vunpack.c.h.b16 %v920
      %v935 = vpack.c.b16 %v929, %v927
      %v936 = vpack.c.b16 %v930, %v928
      %v937 = vpack.c.b16 %v933, %v931
      %v938 = vpack.c.b16 %v934, %v932
      %v944 = vsel %vm649, %v922, 0
      %946 = vmatprep.subr.bf16.mxu0 0
      %947 = vmatpush1.bf16.msra.mxu0 0
      %948 = vmatprep.subr.bf16.mxu0 0
      %949 = vmatpush1.bf16.msra.mxu0 0
      %950 = vmatprep.subr.bf16.mxu0 0
      %951 = vmatpush1.bf16.msra.mxu0 0
      %952 = vmatprep.subr.bf16.mxu0 0
      %953 = vmatpush1.bf16.msra.mxu0 0
      %954 = vmatprep.subr.bf16.mxu0 0
      %955 = vmatpush1.bf16.msra.mxu0 0
      %956 = vmatprep.subr.bf16.mxu0 0
      %957 = vmatpush1.bf16.msra.mxu0 0
      %958 = vmatprep.subr.bf16.mxu0 %v938
      %959 = vmatpush1.bf16.msra.mxu0 %v937
      %960 = vmatprep.subr.bf16.mxu0 %v936
      %961 = vmatpush1.bf16.msra.mxu0 %v935
      %962 = vmatprep.subr.bf16.mxu0 0
      %963 = vmatpush2.bf16.msra.mxu0 0
      %964 = vmatprep.subr.bf16.mxu0 0
      %965 = vmatpush2.bf16.msra.mxu0 0
      %966 = vmatprep.subr.bf16.mxu0 0
      %967 = vmatpush2.bf16.msra.mxu0 0
      %968 = vmatprep.subr.bf16.mxu0 0
      %969 = vmatpush2.bf16.msra.mxu0 0
      %970 = vmatprep.subr.bf16.mxu0 0
      %971 = vmatpush2.bf16.msra.mxu0 0
      %972 = vmatprep.subr.bf16.mxu0 0
      %973 = vmatpush2.bf16.msra.mxu0 0
      %974 = vmatprep.subr.bf16.mxu0 0
      %975 = vmatpush2.bf16.msra.mxu0 0
      %976 = vmatprep.subr.bf16.mxu0 0
      %977 = vmatpush2.bf16.msra.mxu0 0
      %978 = vmatprep.mubr.bf16.mxu0 0
      %979 = vmatmul.mubr.bf16.gmra.mxu0 %v944
      %v980 = vpop.f32.mrf.mxu0
      %v981 = vadd.f32 0.0, %v980
      %v982 = vpop.f32.mrf.mxu0
      %v983 = vadd.f32 0.0, %v982
      %v984 = vpop.f32.mrf.mxu0
      %v985 = vpop.f32.mrf.mxu0
      %986 = vdwg.mxu0
      %v987 = vadd.f32 %v915, %v981
      %v988 = vadd.f32 %v916, %v983
      %v989 = vld [vmem:[#allocation2 + $0x4] sm:$0xff]
      %v990 = vld [vmem:[#allocation2 + $0xc] sm:$0xf]
      %v991 = vld [vmem:[#allocation2 + $0x14] sm:$0xff]
      %v992 = vld [vmem:[#allocation2 + $0x1c] sm:$0xf]
      %v993 = vld [vmem:[#allocation2 + $0x24] sm:$0xff]
      %v994 = vld [vmem:[#allocation2 + $0x2c] sm:$0xf]
      %v995 = vld [vmem:[#allocation2 + $0x34] sm:$0xff]
      %v996 = vld [vmem:[#allocation2 + $0x3c] sm:$0xf]
      %s997 = scalar_lea.vmem %s5, 20
      %v998 = vld [vmem:[%s997] sm:$0xf]
      %v1007 = vunpack.c.l.b16 %v989
      %v1008 = vunpack.c.h.b16 %v989
      %v1009 = vunpack.c.l.b16 %v990
      %v1010 = vunpack.c.l.b16 %v991
      %v1011 = vunpack.c.h.b16 %v991
      %v1012 = vunpack.c.l.b16 %v992
      %v1013 = vunpack.c.l.b16 %v993
      %v1014 = vunpack.c.h.b16 %v993
      %v1015 = vunpack.c.l.b16 %v994
      %v1016 = vunpack.c.l.b16 %v995
      %v1017 = vunpack.c.h.b16 %v995
      %v1018 = vunpack.c.l.b16 %v996
      %v1019 = vpack.c.b16 %v1010, %v1007
      %v1020 = vpack.c.b16 %v1011, %v1008
      %v1021 = vpack.c.b16 %v1012, %v1009
      %v1022 = vpack.c.b16 %v1016, %v1013
      %v1023 = vpack.c.b16 %v1017, %v1014
      %v1024 = vpack.c.b16 %v1018, %v1015
      %1025 = vrot.lane.b32.xlu0 %v1019, 127
      %v1026 = vpop.permute.xlu0 %1025
      %1027 = vrot.lane.b32.xlu0 %v1020, 127
      %v1028 = vpop.permute.xlu0 %1027
      %1029 = vrot.lane.b32.xlu0 %v1021, 127
      %v1030 = vpop.permute.xlu0 %1029
      %1031 = vrot.lane.b32.xlu0 %v1022, 127
      %v1032 = vpop.permute.xlu0 %1031
      %1033 = vrot.lane.b32.xlu0 %v1023, 127
      %v1034 = vpop.permute.xlu0 %1033
      %1035 = vrot.lane.b32.xlu0 %v1024, 127
      %v1036 = vpop.permute.xlu0 %1035
      %vm1037 = vcmask 1039360
      %v1038 = vsel %vm1037, %v1026, %v1028
      %v1039 = vsel %vm1037, %v1028, %v1030
      %v1040 = vsel %vm1037, %v1032, %v1034
      %v1041 = vsel %vm1037, %v1034, %v1036
      %v1047 = vsel %vm649, %v998, 0
      %1049 = vmatprep.subr.bf16.mxu0 0
      %1050 = vmatpush1.bf16.msra.mxu0 0
      %1051 = vmatprep.subr.bf16.mxu0 0
      %1052 = vmatpush1.bf16.msra.mxu0 0
      %1053 = vmatprep.subr.bf16.mxu0 0
      %1054 = vmatpush1.bf16.msra.mxu0 0
      %1055 = vmatprep.subr.bf16.mxu0 0
      %1056 = vmatpush1.bf16.msra.mxu0 0
      %1057 = vmatprep.subr.bf16.mxu0 0
      %1058 = vmatpush1.bf16.msra.mxu0 0
      %1059 = vmatprep.subr.bf16.mxu0 0
      %1060 = vmatpush1.bf16.msra.mxu0 0
      %1061 = vmatprep.subr.bf16.mxu0 %v1041
      %1062 = vmatpush1.bf16.msra.mxu0 %v1040
      %1063 = vmatprep.subr.bf16.mxu0 %v1039
      %1064 = vmatpush1.bf16.msra.mxu0 %v1038
      %1065 = vmatprep.subr.bf16.mxu0 0
      %1066 = vmatpush2.bf16.msra.mxu0 0
      %1067 = vmatprep.subr.bf16.mxu0 0
      %1068 = vmatpush2.bf16.msra.mxu0 0
      %1069 = vmatprep.subr.bf16.mxu0 0
      %1070 = vmatpush2.bf16.msra.mxu0 0
      %1071 = vmatprep.subr.bf16.mxu0 0
      %1072 = vmatpush2.bf16.msra.mxu0 0
      %1073 = vmatprep.subr.bf16.mxu0 0
      %1074 = vmatpush2.bf16.msra.mxu0 0
      %1075 = vmatprep.subr.bf16.mxu0 0
      %1076 = vmatpush2.bf16.msra.mxu0 0
      %1077 = vmatprep.subr.bf16.mxu0 0
      %1078 = vmatpush2.bf16.msra.mxu0 0
      %1079 = vmatprep.subr.bf16.mxu0 0
      %1080 = vmatpush2.bf16.msra.mxu0 0
      %1081 = vmatprep.mubr.bf16.mxu0 0
      %1082 = vmatmul.mubr.bf16.gmra.mxu0 %v1047
      %v1083 = vpop.f32.mrf.mxu0
      %v1084 = vadd.f32 0.0, %v1083
      %v1085 = vpop.f32.mrf.mxu0
      %v1086 = vadd.f32 0.0, %v1085
      %v1087 = vpop.f32.mrf.mxu0
      %v1088 = vpop.f32.mrf.mxu0
      %1089 = vdwg.mxu0
      %v1090 = vsel %vm840, %v1084, 0.0
      %v1091 = vsel %vm841, %v1086, 0.0
      %v1092 = vadd.f32 %v987, %v1090
      %v1093 = vadd.f32 %v988, %v1091
      %s1094 = scalar_lea.vmem %s5, 24
      %v1095 = vld [vmem:[%s1094] sm:$0xf]
      %1096 = vrot.lane.b32.xlu0 %v1019, 113
      %v1097 = vpop.permute.xlu0 %1096
      %1098 = vrot.lane.b32.xlu0 %v1020, 113
      %v1099 = vpop.permute.xlu0 %1098
      %1100 = vrot.lane.b32.xlu0 %v1021, 113
      %v1101 = vpop.permute.xlu0 %1100
      %1102 = vrot.lane.b32.xlu0 %v1022, 113
      %v1103 = vpop.permute.xlu0 %1102
      %1104 = vrot.lane.b32.xlu0 %v1023, 113
      %v1105 = vpop.permute.xlu0 %1104
      %1106 = vrot.lane.b32.xlu0 %v1024, 113
      %v1107 = vpop.permute.xlu0 %1106
      %vm1108 = vcmask 924672
      %v1109 = vsel %vm1108, %v1097, %v1099
      %v1110 = vsel %vm1108, %v1099, %v1101
      %v1111 = vsel %vm1108, %v1103, %v1105
      %v1112 = vsel %vm1108, %v1105, %v1107
      %v1118 = vsel %vm649, %v1095, 0
      %1120 = vmatprep.subr.bf16.mxu0 0
      %1121 = vmatpush1.bf16.msra.mxu0 0
      %1122 = vmatprep.subr.bf16.mxu0 0
      %1123 = vmatpush1.bf16.msra.mxu0 0
      %1124 = vmatprep.subr.bf16.mxu0 0
      %1125 = vmatpush1.bf16.msra.mxu0 0
      %1126 = vmatprep.subr.bf16.mxu0 0
      %1127 = vmatpush1.bf16.msra.mxu0 0
      %1128 = vmatprep.subr.bf16.mxu0 0
      %1129 = vmatpush1.bf16.msra.mxu0 0
      %1130 = vmatprep.subr.bf16.mxu0 0
      %1131 = vmatpush1.bf16.msra.mxu0 0
      %1132 = vmatprep.subr.bf16.mxu0 %v1112
      %1133 = vmatpush1.bf16.msra.mxu0 %v1111
      %1134 = vmatprep.subr.bf16.mxu0 %v1110
      %1135 = vmatpush1.bf16.msra.mxu0 %v1109
      %1136 = vmatprep.subr.bf16.mxu0 0
      %1137 = vmatpush2.bf16.msra.mxu0 0
      %1138 = vmatprep.subr.bf16.mxu0 0
      %1139 = vmatpush2.bf16.msra.mxu0 0
      %1140 = vmatprep.subr.bf16.mxu0 0
      %1141 = vmatpush2.bf16.msra.mxu0 0
      %1142 = vmatprep.subr.bf16.mxu0 0
      %1143 = vmatpush2.bf16.msra.mxu0 0
      %1144 = vmatprep.subr.bf16.mxu0 0
      %1145 = vmatpush2.bf16.msra.mxu0 0
      %1146 = vmatprep.subr.bf16.mxu0 0
      %1147 = vmatpush2.bf16.msra.mxu0 0
      %1148 = vmatprep.subr.bf16.mxu0 0
      %1149 = vmatpush2.bf16.msra.mxu0 0
      %1150 = vmatprep.subr.bf16.mxu0 0
      %1151 = vmatpush2.bf16.msra.mxu0 0
      %1152 = vmatprep.mubr.bf16.mxu0 0
      %1153 = vmatmul.mubr.bf16.gmra.mxu0 %v1118
      %v1154 = vpop.f32.mrf.mxu0
      %v1155 = vadd.f32 0.0, %v1154
      %v1156 = vpop.f32.mrf.mxu0
      %v1157 = vadd.f32 0.0, %v1156
      %v1158 = vpop.f32.mrf.mxu0
      %v1159 = vpop.f32.mrf.mxu0
      %1160 = vdwg.mxu0
      %v1161 = vsel %vm696, %v1155, 0.0
      %v1162 = vsel %vm697, %v1157, 0.0
      %v1163 = vadd.f32 %v1092, %v1161
      %v1164 = vadd.f32 %v1093, %v1162
      %s1165 = scalar_lea.vmem %s5, 28
      %v1166 = vld [vmem:[%s1165] sm:$0xf]
      %1167 = vrot.lane.b32.xlu0 %v1019, 112
      %v1168 = vpop.permute.xlu0 %1167
      %1169 = vrot.lane.b32.xlu0 %v1020, 112
      %v1170 = vpop.permute.xlu0 %1169
      %1171 = vrot.lane.b32.xlu0 %v1021, 112
      %v1172 = vpop.permute.xlu0 %1171
      %1173 = vrot.lane.b32.xlu0 %v1022, 112
      %v1174 = vpop.permute.xlu0 %1173
      %1175 = vrot.lane.b32.xlu0 %v1023, 112
      %v1176 = vpop.permute.xlu0 %1175
      %1177 = vrot.lane.b32.xlu0 %v1024, 112
      %v1178 = vpop.permute.xlu0 %1177
      %vm1179 = vcmask 916480
      %v1180 = vsel %vm1179, %v1168, %v1170
      %v1181 = vsel %vm1179, %v1170, %v1172
      %v1182 = vsel %vm1179, %v1174, %v1176
      %v1183 = vsel %vm1179, %v1176, %v1178
      %v1189 = vsel %vm649, %v1166, 0
      %1191 = vmatprep.subr.bf16.mxu0 0
      %1192 = vmatpush1.bf16.msra.mxu0 0
      %1193 = vmatprep.subr.bf16.mxu0 0
      %1194 = vmatpush1.bf16.msra.mxu0 0
      %1195 = vmatprep.subr.bf16.mxu0 0
      %1196 = vmatpush1.bf16.msra.mxu0 0
      %1197 = vmatprep.subr.bf16.mxu0 0
      %1198 = vmatpush1.bf16.msra.mxu0 0
      %1199 = vmatprep.subr.bf16.mxu0 0
      %1200 = vmatpush1.bf16.msra.mxu0 0
      %1201 = vmatprep.subr.bf16.mxu0 0
      %1202 = vmatpush1.bf16.msra.mxu0 0
      %1203 = vmatprep.subr.bf16.mxu0 %v1183
      %1204 = vmatpush1.bf16.msra.mxu0 %v1182
      %1205 = vmatprep.subr.bf16.mxu0 %v1181
      %1206 = vmatpush1.bf16.msra.mxu0 %v1180
      %1207 = vmatprep.subr.bf16.mxu0 0
      %1208 = vmatpush2.bf16.msra.mxu0 0
      %1209 = vmatprep.subr.bf16.mxu0 0
      %1210 = vmatpush2.bf16.msra.mxu0 0
      %1211 = vmatprep.subr.bf16.mxu0 0
      %1212 = vmatpush2.bf16.msra.mxu0 0
      %1213 = vmatprep.subr.bf16.mxu0 0
      %1214 = vmatpush2.bf16.msra.mxu0 0
      %1215 = vmatprep.subr.bf16.mxu0 0
      %1216 = vmatpush2.bf16.msra.mxu0 0
      %1217 = vmatprep.subr.bf16.mxu0 0
      %1218 = vmatpush2.bf16.msra.mxu0 0
      %1219 = vmatprep.subr.bf16.mxu0 0
      %1220 = vmatpush2.bf16.msra.mxu0 0
      %1221 = vmatprep.subr.bf16.mxu0 0
      %1222 = vmatpush2.bf16.msra.mxu0 0
      %1223 = vmatprep.mubr.bf16.mxu0 0
      %1224 = vmatmul.mubr.bf16.gmra.mxu0 %v1189
      %v1225 = vpop.f32.mrf.mxu0
      %v1226 = vadd.f32 0.0, %v1225
      %v1227 = vpop.f32.mrf.mxu0
      %v1228 = vadd.f32 0.0, %v1227
      %v1229 = vpop.f32.mrf.mxu0
      %v1230 = vpop.f32.mrf.mxu0
      %1231 = vdwg.mxu0
      %v1232 = vadd.f32 %v1163, %v1226
      %v1233 = vadd.f32 %v1164, %v1228
      %s1234 = scalar_lea.vmem %s5, 32
      %v1235 = vld [vmem:[%s1234] sm:$0xf]
      %1236 = vrot.lane.b32.xlu0 %v1019, 111
      %v1237 = vpop.permute.xlu0 %1236
      %1238 = vrot.lane.b32.xlu0 %v1020, 111
      %v1239 = vpop.permute.xlu0 %1238
      %1240 = vrot.lane.b32.xlu0 %v1021, 111
      %v1241 = vpop.permute.xlu0 %1240
      %1242 = vrot.lane.b32.xlu0 %v1022, 111
      %v1243 = vpop.permute.xlu0 %1242
      %1244 = vrot.lane.b32.xlu0 %v1023, 111
      %v1245 = vpop.permute.xlu0 %1244
      %1246 = vrot.lane.b32.xlu0 %v1024, 111
      %v1247 = vpop.permute.xlu0 %1246
      %vm1248 = vcmask 908288
      %v1249 = vsel %vm1248, %v1237, %v1239
      %v1250 = vsel %vm1248, %v1239, %v1241
      %v1251 = vsel %vm1248, %v1243, %v1245
      %v1252 = vsel %vm1248, %v1245, %v1247
      %v1258 = vsel %vm649, %v1235, 0
      %1260 = vmatprep.subr.bf16.mxu0 0
      %1261 = vmatpush1.bf16.msra.mxu0 0
      %1262 = vmatprep.subr.bf16.mxu0 0
      %1263 = vmatpush1.bf16.msra.mxu0 0
      %1264 = vmatprep.subr.bf16.mxu0 0
      %1265 = vmatpush1.bf16.msra.mxu0 0
      %1266 = vmatprep.subr.bf16.mxu0 0
      %1267 = vmatpush1.bf16.msra.mxu0 0
      %1268 = vmatprep.subr.bf16.mxu0 0
      %1269 = vmatpush1.bf16.msra.mxu0 0
      %1270 = vmatprep.subr.bf16.mxu0 0
      %1271 = vmatpush1.bf16.msra.mxu0 0
      %1272 = vmatprep.subr.bf16.mxu0 %v1252
      %1273 = vmatpush1.bf16.msra.mxu0 %v1251
      %1274 = vmatprep.subr.bf16.mxu0 %v1250
      %1275 = vmatpush1.bf16.msra.mxu0 %v1249
      %1276 = vmatprep.subr.bf16.mxu0 0
      %1277 = vmatpush2.bf16.msra.mxu0 0
      %1278 = vmatprep.subr.bf16.mxu0 0
      %1279 = vmatpush2.bf16.msra.mxu0 0
      %1280 = vmatprep.subr.bf16.mxu0 0
      %1281 = vmatpush2.bf16.msra.mxu0 0
      %1282 = vmatprep.subr.bf16.mxu0 0
      %1283 = vmatpush2.bf16.msra.mxu0 0
      %1284 = vmatprep.subr.bf16.mxu0 0
      %1285 = vmatpush2.bf16.msra.mxu0 0
      %1286 = vmatprep.subr.bf16.mxu0 0
      %1287 = vmatpush2.bf16.msra.mxu0 0
      %1288 = vmatprep.subr.bf16.mxu0 0
      %1289 = vmatpush2.bf16.msra.mxu0 0
      %1290 = vmatprep.subr.bf16.mxu0 0
      %1291 = vmatpush2.bf16.msra.mxu0 0
      %1292 = vmatprep.mubr.bf16.mxu0 0
      %1293 = vmatmul.mubr.bf16.gmra.mxu0 %v1258
      %v1294 = vpop.f32.mrf.mxu0
      %v1295 = vadd.f32 0.0, %v1294
      %v1296 = vpop.f32.mrf.mxu0
      %v1297 = vadd.f32 0.0, %v1296
      %v1298 = vpop.f32.mrf.mxu0
      %v1299 = vpop.f32.mrf.mxu0
      %1300 = vdwg.mxu0
      %v1301 = vsel %vm840, %v1295, 0.0
      %v1302 = vsel %vm841, %v1297, 0.0
      %v1303 = vadd.f32 %v1232, %v1301
      %v1304 = vadd.f32 %v1233, %v1302
      %1305 = vst [vmem:[%s251] sm:$0xff] %v1303
      %1306 = vst [vmem:[%s251 + $0x8] sm:$0xff] %v1304
      %p1307 = scmp.lt.s32.totalorder %s17, 1
      %s1308 = scalar_select %p1307, %s17, 1
      %s1309 = smul.addr %s1308, 2
      %s1310 = smul.addr %s1309, 8
      %s1311 = scalar_lea.vmem %s6, %s1310
      // Predicated region
      $region45: #{dense_layer_forward.1} parent=43 // pred_check
        %p1312 = pneg %p166
      $region46: #{dense_layer_forward.1} parent=43 // pred_check_branch
        %1314 = sbr.rel (%p1312) target = $region48
      $region47: #{dense_layer_forward.1} parent=43 // pred_region
        _
      $region48: #{dense_layer_forward.1} parent=43 // pred_fallthru
        _
    $region44: #{dense_layer_forward.1} parent=5 // pred_fallthru
      _
    %p1315 = scmp.le.s32.totalorder 2, %s12
    // Predicated region
    $region49: #{dense_layer_forward.1} parent=5 // pred_check
      %p1316 = pneg %p1315
    $region50: #{dense_layer_forward.1} parent=5 // pred_check_branch
      %1318 = sbr.rel (%p1316) target = $region52
    $region51: #{dense_layer_forward.1} parent=5 // pred_region
      %s1319 = ssub.s32 %s12, 2
      // Predicated region
      $region53: #{dense_layer_forward.1} parent=51 // pred_check
        %p1320 = pneg %p172
      $region54: #{dense_layer_forward.1} parent=51 // pred_check_branch
        %1322 = sbr.rel (%p1320) target = $region56
      $region55: #{dense_layer_forward.1} parent=51 // pred_region
        %p1323 = scmp.lt.s32.totalorder %s18, 1
        %s1324 = scalar_select %p1323, %s18, 1
        %s1325 = smul.addr %s1324, 2
        %s1326 = smul.addr %s1325, 8
        %s1327 = scalar_lea.vmem %s6, %s1326
      $region56: #{dense_layer_forward.1} parent=51 // pred_fallthru
        _
    $region52: #{dense_layer_forward.1} parent=5 // pred_fallthru
      _
  $region6: #{dense_layer_forward.1} parent=0 // loop_footer
    %s16 = sadd.s32 1, %s12
  $region7: #{dense_layer_forward.1} parent=0 // loop_footer_branch
    %11 = sbr.rel target = $region3
  $region8: #{dense_layer_forward.1} parent=0 // loop_exit
    _

</llo_original>
